<compile_context>
chip_gen: v5e
topology: v5e:2x2
jax: 0.10.0
libtpu: 0.0.40
codegen_flags: <defaults>
</compile_context>

<pallas_src>
import functools
import math

import jax
import jax.numpy as jnp
from jax.experimental import pallas as pl
from jax.experimental.pallas import tpu as pltpu


# ----------------------------- model config ---------------------------------
D_MODEL = 32
N_HEAD = 4
HEAD_DIM = D_MODEL // N_HEAD
D_FF = 4 * D_MODEL
LN_EPS = 1e-5

_WEIGHT_ORDER = (
    "ln1_w", "ln1_b",
    "wq", "bq", "wk", "bk", "wv", "bv",
    "wo", "bo",
    "ln2_w", "ln2_b",
    "wfc", "bfc", "wproj", "bproj",
)


# ----------------------------- kernel helpers --------------------------------
def _layernorm(x, gamma, beta):
    # Matches the LayerNorm subclass: compute in fp32, cast back to input dtype.
    xf = x.astype(jnp.float32)
    mu = jnp.mean(xf, axis=-1, keepdims=True)
    var = jnp.mean((xf - mu) ** 2, axis=-1, keepdims=True)
    y = (xf - mu) * jax.lax.rsqrt(var + LN_EPS)
    y = y * gamma.astype(jnp.float32) + beta.astype(jnp.float32)
    return y.astype(x.dtype)


# ------------------------------- the kernel ----------------------------------
def _block_kernel(*refs, has_qpos, has_pos):
    it = iter(refs)
    q_ref = next(it)            # (L, B, D)  seq-first block
    k_ref = next(it)            # (S, B, D)
    v_ref = next(it)            # (S, B, D)
    qpos_ref = next(it) if has_qpos else None
    pos_ref = next(it) if has_pos else None
    (ln1_w_ref, ln1_b_ref,
     wq_ref, bq_ref, wk_ref, bk_ref, wv_ref, bv_ref,
     wo_ref, bo_ref,
     ln2_w_ref, ln2_b_ref,
     wfc_ref, bfc_ref, wproj_ref, bproj_ref,
     out_ref) = list(it)

    L, B, D = q_ref.shape
    S = k_ref.shape[0]
    LB, SB = L * B, S * B

    # flatten (seq, batch) -> rows for all position-wise math (big matmul M-dim)
    x = q_ref[...].reshape(LB, D)
    k = k_ref[...].reshape(SB, D)
    v = v_ref[...].reshape(SB, D)

    # --- ln_1 + positional embeds (specialized: no zero tensors) ---
    ln1 = _layernorm(x, ln1_w_ref[...], ln1_b_ref[...])
    q_in = ln1.astype(jnp.float32)
    if has_qpos:
        q_in = q_in + qpos_ref[...].reshape(LB, D).astype(jnp.float32)
    k_in = k.astype(jnp.float32)
    if has_pos:
        k_in = k_in + pos_ref[...].reshape(SB, D).astype(jnp.float32)

    # --- QKV projections as 2-D matmuls over the whole tile ---
    Q = jnp.dot(q_in, wq_ref[...], preferred_element_type=jnp.float32) + bq_ref[...]
    K = jnp.dot(k_in, wk_ref[...], preferred_element_type=jnp.float32) + bk_ref[...]
    V = jnp.dot(v.astype(jnp.float32), wv_ref[...],
                preferred_element_type=jnp.float32) + bv_ref[...]
    Q = Q * (1.0 / math.sqrt(HEAD_DIM))            # scale folded once

    # --- in-VMEM relayout seq-major -> batch-major (replaces wrapper transposes) ---
    Qb = pltpu.einshape("lbd->bld", Q.reshape(L, B, D))    # (B, L, D)
    Kb = pltpu.einshape("sbd->bsd", K.reshape(S, B, D))    # (B, S, D)
    Vb = pltpu.einshape("sbd->bsd", V.reshape(S, B, D))    # (B, S, D)

    # --- one batched contraction over g = head*B + batch (no per-head loop) ---
    hd = HEAD_DIM
    qg = jnp.concatenate([Qb[:, :, h * hd:(h + 1) * hd] for h in range(N_HEAD)], axis=0)
    kg = jnp.concatenate([Kb[:, :, h * hd:(h + 1) * hd] for h in range(N_HEAD)], axis=0)
    vg = jnp.concatenate([Vb[:, :, h * hd:(h + 1) * hd] for h in range(N_HEAD)], axis=0)

    s = jnp.einsum("gld,gsd->gls", qg, kg, preferred_element_type=jnp.float32)
    s = s - jnp.max(s, axis=-1, keepdims=True)
    p = jnp.exp(s)
    # NOTE: approx reciprocal (EUP) — ~2^-12 rel. error vs exact softmax.
    p = p * pl.reciprocal(jnp.sum(p, axis=-1, keepdims=True), approx=True)
    av = jnp.einsum("gls,gsd->gld", p, vg, preferred_element_type=jnp.float32)  # (H*B, L, hd)

    # reassemble heads on the lane axis, back to seq-major rows
    avb = jnp.concatenate([av[h * B:(h + 1) * B] for h in range(N_HEAD)], axis=-1)  # (B, L, D)
    avl = pltpu.einshape("bld->lbd", avb).reshape(LB, D)

    # single full-depth (K = D) output projection
    attn = jnp.dot(avl, wo_ref[...], preferred_element_type=jnp.float32) + bo_ref[...]

    # --- first residual ---
    q1 = x + attn.astype(x.dtype)

    # --- ln_2 + MLP (c_fc -> QuickGELU -> c_proj) ---
    ln2 = _layernorm(q1, ln2_w_ref[...], ln2_b_ref[...])
    h1 = jnp.dot(ln2.astype(jnp.float32), wfc_ref[...],
                 preferred_element_type=jnp.float32) + bfc_ref[...]
    g = h1 * jax.nn.sigmoid(1.702 * h1)            # QuickGELU
    m = jnp.dot(g, wproj_ref[...], preferred_element_type=jnp.float32) + bproj_ref[...]

    out = q1 + m.astype(x.dtype)
    out_ref[...] = out.reshape(L, B, D).astype(out_ref.dtype)


# ------------------------------- wrappers -------------------------------------
def _choose_b_tile(n, l, s, has_qpos, has_pos, itemsize):
    """Biggest batch tile that fits a conservative VMEM budget.

    Single grid step whenever possible (fewest pipeline overheads; strictly best
    on single-TensorCore v5e/v6e, fine on v7x).  No forced splitting."""
    io = (l + 2 * s + (l if has_qpos else 0) + (s if has_pos else 0) + l) * D_MODEL * itemsize
    work = (3 * (l + 2 * s) * D_MODEL + 2 * N_HEAD * l * s + 3 * l * D_FF) * 4
    per_batch = 2 * io + work                      # double-buffered I/O + f32 working set
    budget = 8 << 20                               # headroom under every gen's scoped VMEM
    bt = max(1, budget // per_batch)
    if bt >= n or n <= 8:
        return n
    return max(8, (bt // 8) * 8)                   # partial tiles keep sublane alignment


def residual_fully_cross_attention_block(q, k, v, params,
                                         v_key_padding_mask=None,
                                         pos=None, q_pos=None, b_tile=None):
    """Seq-first convention (PyTorch nn.MultiheadAttention):
    q (L, N, D), k/v/pos (S, N, D), q_pos (L, N, D).  Consumed directly —
    no wrapper-side transposes."""
    # TODO(synk): v_key_padding_mask path not implemented (caller passes None).
    assert v_key_padding_mask is None
    L, N, D = q.shape
    S = k.shape[0]
    assert D == D_MODEL

    has_qpos = q_pos is not None
    has_pos = pos is not None

    if b_tile is None:
        b_tile = _choose_b_tile(N, L, S, has_qpos, has_pos, q.dtype.itemsize)
    grid = (pl.cdiv(N, b_tile),)

    def act_spec(seq_len):
        return pl.BlockSpec((seq_len, b_tile, D), lambda n: (0, n, 0))

    def w_spec(shape):
        # constant index_map -> weights stay resident across grid steps
        return pl.BlockSpec(shape, lambda n: (0,) * len(shape))

    inputs = [q, k, v]
    in_specs = [act_spec(L), act_spec(S), act_spec(S)]
    if has_qpos:
        inputs.append(q_pos)
        in_specs.append(act_spec(L))
    if has_pos:
        inputs.append(pos)
        in_specs.append(act_spec(S))
    inputs += [params[name] for name in _WEIGHT_ORDER]
    in_specs += [w_spec(params[name].shape) for name in _WEIGHT_ORDER]

    kernel = functools.partial(_block_kernel, has_qpos=has_qpos, has_pos=has_pos)

    return pl.pallas_call(
        kernel,
        out_shape=jax.ShapeDtypeStruct((L, N, D), q.dtype),
        grid_spec=pltpu.PrefetchScalarGridSpec(
            num_scalar_prefetch=0,
            grid=grid,
            in_specs=in_specs,
            out_specs=act_spec(L),
        ),
        compiler_params=pltpu.CompilerParams(
            dimension_semantics=("parallel",),
            vmem_limit_bytes=32 * 1024 * 1024),
    )(*inputs)


# --------------------------- pure-JAX reference -------------------------------
def _reference(q, k, v, p, pos=None, q_pos=None):
    def ln(x, g, b):
        mu = jnp.mean(x, -1, keepdims=True)
        var = jnp.mean((x - mu) ** 2, -1, keepdims=True)
        return (x - mu) * jax.lax.rsqrt(var + LN_EPS) * g + b

    L, N, D = q.shape
    S = k.shape[0]
    q_in = ln(q, p["ln1_w"], p["ln1_b"]) + (0.0 if q_pos is None else q_pos)
    k_in = k + (0.0 if pos is None else pos)
    Q = q_in @ p["wq"] + p["bq"]
    K = k_in @ p["wk"] + p["bk"]
    V = v @ p["wv"] + p["bv"]

    def split(x, seq):
        return x.reshape(seq, N, N_HEAD, HEAD_DIM).transpose(1, 2, 0, 3)  # (N,H,seq,hd)

    Qh, Kh, Vh = split(Q, L), split(K, S), split(V, S)
    s = jnp.einsum("nhld,nhsd->nhls", Qh, Kh) / (HEAD_DIM ** 0.5)
    pr = jax.nn.softmax(s, axis=-1)
    o = jnp.einsum("nhls,nhsd->nhld", pr, Vh)            # (N,H,L,hd)
    o = o.transpose(2, 0, 1, 3).reshape(L, N, D)
    attn = o @ p["wo"] + p["bo"]
    q1 = q + attn
    h = ln(q1, p["ln2_w"], p["ln2_b"]) @ p["wfc"] + p["bfc"]
    g = h * jax.nn.sigmoid(1.702 * h)
    return q1 + g @ p["wproj"] + p["bproj"]


# ---------------------------------- main --------------------------------------
def _init_params(key):
    ks = jax.random.split(key, 8)
    scale = 0.02
    return {
        "ln1_w": jnp.ones((1, D_MODEL), jnp.float32),
        "ln1_b": jnp.zeros((1, D_MODEL), jnp.float32),
        "wq": scale * jax.random.normal(ks[0], (D_MODEL, D_MODEL), jnp.float32),
        "wk": scale * jax.random.normal(ks[1], (D_MODEL, D_MODEL), jnp.float32),
        "wv": scale * jax.random.normal(ks[2], (D_MODEL, D_MODEL), jnp.float32),
        "bq": jnp.zeros((1, D_MODEL), jnp.float32),
        "bk": jnp.zeros((1, D_MODEL), jnp.float32),
        "bv": jnp.zeros((1, D_MODEL), jnp.float32),
        "wo": scale * jax.random.normal(ks[3], (D_MODEL, D_MODEL), jnp.float32),
        "bo": 0.01 * jnp.ones((1, D_MODEL), jnp.float32),
        "ln2_w": jnp.ones((1, D_MODEL), jnp.float32),
        "ln2_b": jnp.zeros((1, D_MODEL), jnp.float32),
        "wfc": scale * jax.random.normal(ks[4], (D_MODEL, D_FF), jnp.float32),
        "bfc": 0.01 * jnp.ones((1, D_FF), jnp.float32),
        "wproj": scale * jax.random.normal(ks[5], (D_FF, D_MODEL), jnp.float32),
        "bproj": 0.01 * jnp.ones((1, D_MODEL), jnp.float32),
    }


if __name__ == "__main__":
    key = jax.random.PRNGKey(0)
    kp, kq, kk, kv, kpos, kqpos, kbig = jax.random.split(key, 7)

    L, S, N = 8, 16, 2   # query seq, key/value seq, batch
    params = _init_params(kp)

    q = jax.random.normal(kq, (L, N, D_MODEL), jnp.float32)
    k = jax.random.normal(kk, (S, N, D_MODEL), jnp.float32)
    v = jax.random.normal(kv, (S, N, D_MODEL), jnp.float32)
    pos = jax.random.normal(kpos, (S, N, D_MODEL), jnp.float32)
    q_pos = jax.random.normal(kqpos, (L, N, D_MODEL), jnp.float32)

    # with positional embeddings (single grid step: full batch in one tile)
    out = jax.block_until_ready(
        residual_fully_cross_attention_block(q, k, v, params, pos=pos, q_pos=q_pos))
    ref = _reference(q, k, v, params, pos=pos, q_pos=q_pos)
    assert out.shape == (L, N, D_MODEL)
    assert jnp.allclose(out, ref, rtol=1e-2, atol=1e-2), (
        float(jnp.max(jnp.abs(out - ref))))

    # specialized no-pos path (no zero tensors are DMA'd in this variant)
    out2 = jax.block_until_ready(
        residual_fully_cross_attention_block(q, k, v, params))
    ref2 = _reference(q, k, v, params)
    assert jnp.allclose(out2, ref2, rtol=1e-2, atol=1e-2), (
        float(jnp.max(jnp.abs(out2 - ref2))))

    # exercise the multi-step batch-tiled path (grid > 1, tile multiple of 8)
    N2 = 16
    kq2, kk2, kv2, kpos2, kqpos2 = jax.random.split(kbig, 5)
    q2 = jax.random.normal(kq2, (L, N2, D_MODEL), jnp.float32)
    k2 = jax.random.normal(kk2, (S, N2, D_MODEL), jnp.float32)
    v2 = jax.random.normal(kv2, (S, N2, D_MODEL), jnp.float32)
    pos2 = jax.random.normal(kpos2, (S, N2, D_MODEL), jnp.float32)
    q_pos2 = jax.random.normal(kqpos2, (L, N2, D_MODEL), jnp.float32)
    out3 = jax.block_until_ready(
        residual_fully_cross_attention_block(q2, k2, v2, params,
                                             pos=pos2, q_pos=q_pos2, b_tile=8))
    ref3 = _reference(q2, k2, v2, params, pos=pos2, q_pos=q_pos2)
    assert jnp.allclose(out3, ref3, rtol=1e-2, atol=1e-2), (
        float(jnp.max(jnp.abs(out3 - ref3))))

    print("KERNEL_OK")
</pallas_src>

<mosaic_0001>
module attributes {stable_mosaic.version = 11 : i64} {
  func.func @_block_kernel(%arg0: i32, %arg1: memref<8x2x32xf32, #tpu.memory_space<vmem>>, %arg2: memref<16x2x32xf32, #tpu.memory_space<vmem>>, %arg3: memref<16x2x32xf32, #tpu.memory_space<vmem>>, %arg4: memref<8x2x32xf32, #tpu.memory_space<vmem>>, %arg5: memref<16x2x32xf32, #tpu.memory_space<vmem>>, %arg6: memref<1x32xf32, #tpu.memory_space<vmem>>, %arg7: memref<1x32xf32, #tpu.memory_space<vmem>>, %arg8: memref<32x32xf32, #tpu.memory_space<vmem>>, %arg9: memref<1x32xf32, #tpu.memory_space<vmem>>, %arg10: memref<32x32xf32, #tpu.memory_space<vmem>>, %arg11: memref<1x32xf32, #tpu.memory_space<vmem>>, %arg12: memref<32x32xf32, #tpu.memory_space<vmem>>, %arg13: memref<1x32xf32, #tpu.memory_space<vmem>>, %arg14: memref<32x32xf32, #tpu.memory_space<vmem>>, %arg15: memref<1x32xf32, #tpu.memory_space<vmem>>, %arg16: memref<1x32xf32, #tpu.memory_space<vmem>>, %arg17: memref<1x32xf32, #tpu.memory_space<vmem>>, %arg18: memref<32x128xf32, #tpu.memory_space<vmem>>, %arg19: memref<1x128xf32, #tpu.memory_space<vmem>>, %arg20: memref<128x32xf32, #tpu.memory_space<vmem>>, %arg21: memref<1x32xf32, #tpu.memory_space<vmem>>, %arg22: memref<8x2x32xf32, #tpu.memory_space<vmem>>) attributes {dimension_semantics = [#tpu.dimension_semantics<parallel>], iteration_bounds = array<i64: 1>, scalar_prefetch = 0 : i64, scratch_operands = 0 : i64, tpu.core_type = #tpu.core_type<tc>, window_params = [{transform_indices = @transform_0, window_bounds = array<i64: 8, 2, 32>}, {transform_indices = @transform_1, window_bounds = array<i64: 16, 2, 32>}, {transform_indices = @transform_2, window_bounds = array<i64: 16, 2, 32>}, {transform_indices = @transform_3, window_bounds = array<i64: 8, 2, 32>}, {transform_indices = @transform_4, window_bounds = array<i64: 16, 2, 32>}, {pipeline_mode = #tpu.pipeline_mode<synchronous>, transform_indices = @transform_5, window_bounds = array<i64: 1, 32>}, {pipeline_mode = #tpu.pipeline_mode<synchronous>, transform_indices = @transform_6, window_bounds = array<i64: 1, 32>}, {pipeline_mode = #tpu.pipeline_mode<synchronous>, transform_indices = @transform_7, window_bounds = array<i64: 32, 32>}, {pipeline_mode = #tpu.pipeline_mode<synchronous>, transform_indices = @transform_8, window_bounds = array<i64: 1, 32>}, {pipeline_mode = #tpu.pipeline_mode<synchronous>, transform_indices = @transform_9, window_bounds = array<i64: 32, 32>}, {pipeline_mode = #tpu.pipeline_mode<synchronous>, transform_indices = @transform_10, window_bounds = array<i64: 1, 32>}, {pipeline_mode = #tpu.pipeline_mode<synchronous>, transform_indices = @transform_11, window_bounds = array<i64: 32, 32>}, {pipeline_mode = #tpu.pipeline_mode<synchronous>, transform_indices = @transform_12, window_bounds = array<i64: 1, 32>}, {pipeline_mode = #tpu.pipeline_mode<synchronous>, transform_indices = @transform_13, window_bounds = array<i64: 32, 32>}, {pipeline_mode = #tpu.pipeline_mode<synchronous>, transform_indices = @transform_14, window_bounds = array<i64: 1, 32>}, {pipeline_mode = #tpu.pipeline_mode<synchronous>, transform_indices = @transform_15, window_bounds = array<i64: 1, 32>}, {pipeline_mode = #tpu.pipeline_mode<synchronous>, transform_indices = @transform_16, window_bounds = array<i64: 1, 32>}, {pipeline_mode = #tpu.pipeline_mode<synchronous>, transform_indices = @transform_17, window_bounds = array<i64: 32, 128>}, {pipeline_mode = #tpu.pipeline_mode<synchronous>, transform_indices = @transform_18, window_bounds = array<i64: 1, 128>}, {pipeline_mode = #tpu.pipeline_mode<synchronous>, transform_indices = @transform_19, window_bounds = array<i64: 128, 32>}, {pipeline_mode = #tpu.pipeline_mode<synchronous>, transform_indices = @transform_20, window_bounds = array<i64: 1, 32>}, {transform_indices = @transform_21, window_bounds = array<i64: 8, 2, 32>}]} {
    %c0 = arith.constant 0 : index
    %c0_0 = arith.constant 0 : index
    %c0_1 = arith.constant 0 : index
    %0 = vector.load %arg1[%c0, %c0_0, %c0_1] : memref<8x2x32xf32, #tpu.memory_space<vmem>>, vector<8x2x32xf32>
    %1 = vector.shape_cast %0 : vector<8x2x32xf32> to vector<16x32xf32>
    %c0_2 = arith.constant 0 : index
    %c0_3 = arith.constant 0 : index
    %c0_4 = arith.constant 0 : index
    %2 = vector.load %arg2[%c0_2, %c0_3, %c0_4] : memref<16x2x32xf32, #tpu.memory_space<vmem>>, vector<16x2x32xf32>
    %3 = vector.shape_cast %2 : vector<16x2x32xf32> to vector<32x32xf32>
    %c0_5 = arith.constant 0 : index
    %c0_6 = arith.constant 0 : index
    %c0_7 = arith.constant 0 : index
    %4 = vector.load %arg3[%c0_5, %c0_6, %c0_7] : memref<16x2x32xf32, #tpu.memory_space<vmem>>, vector<16x2x32xf32>
    %5 = vector.shape_cast %4 : vector<16x2x32xf32> to vector<32x32xf32>
    %c0_8 = arith.constant 0 : index
    %c0_9 = arith.constant 0 : index
    %6 = vector.load %arg6[%c0_8, %c0_9] : memref<1x32xf32, #tpu.memory_space<vmem>>, vector<1x32xf32>
    %c0_10 = arith.constant 0 : index
    %c0_11 = arith.constant 0 : index
    %7 = vector.load %arg7[%c0_10, %c0_11] : memref<1x32xf32, #tpu.memory_space<vmem>>, vector<1x32xf32>
    %cst = arith.constant dense<0.000000e+00> : vector<16xf32>
    %8 = vector.multi_reduction <add>, %1, %cst [1] : vector<16x32xf32> to vector<16xf32>
    %9 = vector.shape_cast %8 : vector<16xf32> to vector<16x1xf32>
    %cst_12 = arith.constant 3.200000e+01 : f32
    %10 = vector.broadcast %cst_12 : f32 to vector<16x1xf32>
    %11 = arith.divf %9, %10 : vector<16x1xf32>
    %12 = vector.broadcast %11 : vector<16x1xf32> to vector<16x32xf32>
    %13 = arith.subf %1, %12 : vector<16x32xf32>
    %14 = arith.mulf %13, %13 : vector<16x32xf32>
    %cst_13 = arith.constant dense<0.000000e+00> : vector<16xf32>
    %15 = vector.multi_reduction <add>, %14, %cst_13 [1] : vector<16x32xf32> to vector<16xf32>
    %16 = vector.shape_cast %15 : vector<16xf32> to vector<16x1xf32>
    %cst_14 = arith.constant 3.200000e+01 : f32
    %17 = vector.broadcast %cst_14 : f32 to vector<16x1xf32>
    %18 = arith.divf %16, %17 : vector<16x1xf32>
    %19 = vector.broadcast %11 : vector<16x1xf32> to vector<16x32xf32>
    %20 = arith.subf %1, %19 : vector<16x32xf32>
    %cst_15 = arith.constant 9.99999974E-6 : f32
    %21 = vector.broadcast %cst_15 : f32 to vector<16x1xf32>
    %22 = arith.addf %18, %21 : vector<16x1xf32>
    %23 = math.rsqrt %22 : vector<16x1xf32>
    %24 = vector.broadcast %23 : vector<16x1xf32> to vector<16x32xf32>
    %25 = arith.mulf %20, %24 : vector<16x32xf32>
    %26 = vector.broadcast %6 : vector<1x32xf32> to vector<16x32xf32>
    %27 = arith.mulf %25, %26 : vector<16x32xf32>
    %28 = vector.broadcast %7 : vector<1x32xf32> to vector<16x32xf32>
    %29 = arith.addf %27, %28 : vector<16x32xf32>
    %c0_16 = arith.constant 0 : index
    %c0_17 = arith.constant 0 : index
    %c0_18 = arith.constant 0 : index
    %30 = vector.load %arg4[%c0_16, %c0_17, %c0_18] : memref<8x2x32xf32, #tpu.memory_space<vmem>>, vector<8x2x32xf32>
    %31 = vector.shape_cast %30 : vector<8x2x32xf32> to vector<16x32xf32>
    %32 = arith.addf %29, %31 : vector<16x32xf32>
    %c0_19 = arith.constant 0 : index
    %c0_20 = arith.constant 0 : index
    %c0_21 = arith.constant 0 : index
    %33 = vector.load %arg5[%c0_19, %c0_20, %c0_21] : memref<16x2x32xf32, #tpu.memory_space<vmem>>, vector<16x2x32xf32>
    %34 = vector.shape_cast %33 : vector<16x2x32xf32> to vector<32x32xf32>
    %35 = arith.addf %3, %34 : vector<32x32xf32>
    %c0_22 = arith.constant 0 : index
    %c0_23 = arith.constant 0 : index
    %36 = vector.load %arg8[%c0_22, %c0_23] : memref<32x32xf32, #tpu.memory_space<vmem>>, vector<32x32xf32>
    %cst_24 = arith.constant dense<0.000000e+00> : vector<16x32xf32>
    %37 = tpu.matmul %32, %36, %cst_24 {dimension_numbers = #tpu.dot_dimension_numbers<[1], [0], [0], [1], [0, 0, 1, 1], [], []>} : vector<16x32xf32>, vector<32x32xf32>, vector<16x32xf32> -> vector<16x32xf32>
    %c0_25 = arith.constant 0 : index
    %c0_26 = arith.constant 0 : index
    %38 = vector.load %arg9[%c0_25, %c0_26] : memref<1x32xf32, #tpu.memory_space<vmem>>, vector<1x32xf32>
    %39 = vector.broadcast %38 : vector<1x32xf32> to vector<16x32xf32>
    %40 = arith.addf %37, %39 : vector<16x32xf32>
    %c0_27 = arith.constant 0 : index
    %c0_28 = arith.constant 0 : index
    %41 = vector.load %arg10[%c0_27, %c0_28] : memref<32x32xf32, #tpu.memory_space<vmem>>, vector<32x32xf32>
    %cst_29 = arith.constant dense<0.000000e+00> : vector<32x32xf32>
    %42 = tpu.matmul %35, %41, %cst_29 {dimension_numbers = #tpu.dot_dimension_numbers<[1], [0], [0], [1], [0, 0, 1, 1], [], []>} : vector<32x32xf32>, vector<32x32xf32>, vector<32x32xf32> -> vector<32x32xf32>
    %c0_30 = arith.constant 0 : index
    %c0_31 = arith.constant 0 : index
    %43 = vector.load %arg11[%c0_30, %c0_31] : memref<1x32xf32, #tpu.memory_space<vmem>>, vector<1x32xf32>
    %44 = vector.broadcast %43 : vector<1x32xf32> to vector<32x32xf32>
    %45 = arith.addf %42, %44 : vector<32x32xf32>
    %c0_32 = arith.constant 0 : index
    %c0_33 = arith.constant 0 : index
    %46 = vector.load %arg12[%c0_32, %c0_33] : memref<32x32xf32, #tpu.memory_space<vmem>>, vector<32x32xf32>
    %cst_34 = arith.constant dense<0.000000e+00> : vector<32x32xf32>
    %47 = tpu.matmul %5, %46, %cst_34 {dimension_numbers = #tpu.dot_dimension_numbers<[1], [0], [0], [1], [0, 0, 1, 1], [], []>} : vector<32x32xf32>, vector<32x32xf32>, vector<32x32xf32> -> vector<32x32xf32>
    %c0_35 = arith.constant 0 : index
    %c0_36 = arith.constant 0 : index
    %48 = vector.load %arg13[%c0_35, %c0_36] : memref<1x32xf32, #tpu.memory_space<vmem>>, vector<1x32xf32>
    %49 = vector.broadcast %48 : vector<1x32xf32> to vector<32x32xf32>
    %50 = arith.addf %47, %49 : vector<32x32xf32>
    %cst_37 = arith.constant 0.353553385 : f32
    %51 = vector.broadcast %cst_37 : f32 to vector<16x32xf32>
    %52 = arith.mulf %40, %51 : vector<16x32xf32>
    %53 = vector.shape_cast %52 : vector<16x32xf32> to vector<8x2x32xf32>
    %54 = tpu.transpose %53, [1, 0, 2] : vector<8x2x32xf32> -> vector<2x8x32xf32>
    %55 = vector.shape_cast %45 : vector<32x32xf32> to vector<16x2x32xf32>
    %56 = tpu.transpose %55, [1, 0, 2] : vector<16x2x32xf32> -> vector<2x16x32xf32>
    %57 = vector.shape_cast %50 : vector<32x32xf32> to vector<16x2x32xf32>
    %58 = tpu.transpose %57, [1, 0, 2] : vector<16x2x32xf32> -> vector<2x16x32xf32>
    %59 = vector.extract_strided_slice %54 {offsets = [0, 0, 0], sizes = [2, 8, 8], strides = [1, 1, 1]} : vector<2x8x32xf32> to vector<2x8x8xf32>
    %60 = vector.extract_strided_slice %54 {offsets = [0, 0, 8], sizes = [2, 8, 8], strides = [1, 1, 1]} : vector<2x8x32xf32> to vector<2x8x8xf32>
    %61 = vector.extract_strided_slice %54 {offsets = [0, 0, 16], sizes = [2, 8, 8], strides = [1, 1, 1]} : vector<2x8x32xf32> to vector<2x8x8xf32>
    %62 = vector.extract_strided_slice %54 {offsets = [0, 0, 24], sizes = [2, 8, 8], strides = [1, 1, 1]} : vector<2x8x32xf32> to vector<2x8x8xf32>
    %63 = tpu.concatenate %59, %60, %61, %62 in 0 : vector<2x8x8xf32>, vector<2x8x8xf32>, vector<2x8x8xf32>, vector<2x8x8xf32> -> vector<8x8x8xf32>
    %64 = vector.extract_strided_slice %56 {offsets = [0, 0, 0], sizes = [2, 16, 8], strides = [1, 1, 1]} : vector<2x16x32xf32> to vector<2x16x8xf32>
    %65 = vector.extract_strided_slice %56 {offsets = [0, 0, 8], sizes = [2, 16, 8], strides = [1, 1, 1]} : vector<2x16x32xf32> to vector<2x16x8xf32>
    %66 = vector.extract_strided_slice %56 {offsets = [0, 0, 16], sizes = [2, 16, 8], strides = [1, 1, 1]} : vector<2x16x32xf32> to vector<2x16x8xf32>
    %67 = vector.extract_strided_slice %56 {offsets = [0, 0, 24], sizes = [2, 16, 8], strides = [1, 1, 1]} : vector<2x16x32xf32> to vector<2x16x8xf32>
    %68 = tpu.concatenate %64, %65, %66, %67 in 0 : vector<2x16x8xf32>, vector<2x16x8xf32>, vector<2x16x8xf32>, vector<2x16x8xf32> -> vector<8x16x8xf32>
    %69 = vector.extract_strided_slice %58 {offsets = [0, 0, 0], sizes = [2, 16, 8], strides = [1, 1, 1]} : vector<2x16x32xf32> to vector<2x16x8xf32>
    %70 = vector.extract_strided_slice %58 {offsets = [0, 0, 8], sizes = [2, 16, 8], strides = [1, 1, 1]} : vector<2x16x32xf32> to vector<2x16x8xf32>
    %71 = vector.extract_strided_slice %58 {offsets = [0, 0, 16], sizes = [2, 16, 8], strides = [1, 1, 1]} : vector<2x16x32xf32> to vector<2x16x8xf32>
    %72 = vector.extract_strided_slice %58 {offsets = [0, 0, 24], sizes = [2, 16, 8], strides = [1, 1, 1]} : vector<2x16x32xf32> to vector<2x16x8xf32>
    %73 = tpu.concatenate %69, %70, %71, %72 in 0 : vector<2x16x8xf32>, vector<2x16x8xf32>, vector<2x16x8xf32>, vector<2x16x8xf32> -> vector<8x16x8xf32>
    "tpu.trace_start"() <{level = 10 : i32, message = "gld,gsd->gls"}> : () -> ()
    %cst_38 = arith.constant dense<0.000000e+00> : vector<8x8x16xf32>
    %74 = tpu.matmul %63, %68, %cst_38 {dimension_numbers = #tpu.dot_dimension_numbers<[2], [2], [1], [1], [0, 0, 0, 1, 1, 1], [0], [0]>} : vector<8x8x8xf32>, vector<8x16x8xf32>, vector<8x8x16xf32> -> vector<8x8x16xf32>
    "tpu.trace_stop"() : () -> ()
    %cst_39 = arith.constant dense<0xFF800000> : vector<8x8xf32>
    %75 = vector.multi_reduction <maximumf>, %74, %cst_39 [2] : vector<8x8x16xf32> to vector<8x8xf32>
    %76 = vector.shape_cast %75 : vector<8x8xf32> to vector<8x8x1xf32>
    %77 = vector.broadcast %76 : vector<8x8x1xf32> to vector<8x8x16xf32>
    %78 = arith.subf %74, %77 : vector<8x8x16xf32>
    %79 = math.exp %78 : vector<8x8x16xf32>
    %cst_40 = arith.constant dense<0.000000e+00> : vector<8x8xf32>
    %80 = vector.multi_reduction <add>, %79, %cst_40 [2] : vector<8x8x16xf32> to vector<8x8xf32>
    %81 = vector.shape_cast %80 : vector<8x8xf32> to vector<8x8x1xf32>
    %82 = tpu.reciprocal %81 {approx = true} : vector<8x8x1xf32> -> vector<8x8x1xf32>
    %83 = vector.broadcast %82 : vector<8x8x1xf32> to vector<8x8x16xf32>
    %84 = arith.mulf %79, %83 : vector<8x8x16xf32>
    "tpu.trace_start"() <{level = 10 : i32, message = "gls,gsd->gld"}> : () -> ()
    %cst_41 = arith.constant dense<0.000000e+00> : vector<8x8x8xf32>
    %85 = tpu.matmul %84, %73, %cst_41 {dimension_numbers = #tpu.dot_dimension_numbers<[2], [1], [1], [2], [0, 0, 0, 1, 1, 2], [0], [0]>} : vector<8x8x16xf32>, vector<8x16x8xf32>, vector<8x8x8xf32> -> vector<8x8x8xf32>
    "tpu.trace_stop"() : () -> ()
    %86 = vector.extract_strided_slice %85 {offsets = [0, 0, 0], sizes = [2, 8, 8], strides = [1, 1, 1]} : vector<8x8x8xf32> to vector<2x8x8xf32>
    %87 = vector.extract_strided_slice %85 {offsets = [2, 0, 0], sizes = [2, 8, 8], strides = [1, 1, 1]} : vector<8x8x8xf32> to vector<2x8x8xf32>
    %88 = vector.extract_strided_slice %85 {offsets = [4, 0, 0], sizes = [2, 8, 8], strides = [1, 1, 1]} : vector<8x8x8xf32> to vector<2x8x8xf32>
    %89 = vector.extract_strided_slice %85 {offsets = [6, 0, 0], sizes = [2, 8, 8], strides = [1, 1, 1]} : vector<8x8x8xf32> to vector<2x8x8xf32>
    %90 = tpu.concatenate %86, %87, %88, %89 in 2 : vector<2x8x8xf32>, vector<2x8x8xf32>, vector<2x8x8xf32>, vector<2x8x8xf32> -> vector<2x8x32xf32>
    %91 = tpu.transpose %90, [1, 0, 2] : vector<2x8x32xf32> -> vector<8x2x32xf32>
    %92 = vector.shape_cast %91 : vector<8x2x32xf32> to vector<16x32xf32>
    %c0_42 = arith.constant 0 : index
    %c0_43 = arith.constant 0 : index
    %93 = vector.load %arg14[%c0_42, %c0_43] : memref<32x32xf32, #tpu.memory_space<vmem>>, vector<32x32xf32>
    %cst_44 = arith.constant dense<0.000000e+00> : vector<16x32xf32>
    %94 = tpu.matmul %92, %93, %cst_44 {dimension_numbers = #tpu.dot_dimension_numbers<[1], [0], [0], [1], [0, 0, 1, 1], [], []>} : vector<16x32xf32>, vector<32x32xf32>, vector<16x32xf32> -> vector<16x32xf32>
    %c0_45 = arith.constant 0 : index
    %c0_46 = arith.constant 0 : index
    %95 = vector.load %arg15[%c0_45, %c0_46] : memref<1x32xf32, #tpu.memory_space<vmem>>, vector<1x32xf32>
    %96 = vector.broadcast %95 : vector<1x32xf32> to vector<16x32xf32>
    %97 = arith.addf %94, %96 : vector<16x32xf32>
    %98 = arith.addf %1, %97 : vector<16x32xf32>
    %c0_47 = arith.constant 0 : index
    %c0_48 = arith.constant 0 : index
    %99 = vector.load %arg16[%c0_47, %c0_48] : memref<1x32xf32, #tpu.memory_space<vmem>>, vector<1x32xf32>
    %c0_49 = arith.constant 0 : index
    %c0_50 = arith.constant 0 : index
    %100 = vector.load %arg17[%c0_49, %c0_50] : memref<1x32xf32, #tpu.memory_space<vmem>>, vector<1x32xf32>
    %cst_51 = arith.constant dense<0.000000e+00> : vector<16xf32>
    %101 = vector.multi_reduction <add>, %98, %cst_51 [1] : vector<16x32xf32> to vector<16xf32>
    %102 = vector.shape_cast %101 : vector<16xf32> to vector<16x1xf32>
    %cst_52 = arith.constant 3.200000e+01 : f32
    %103 = vector.broadcast %cst_52 : f32 to vector<16x1xf32>
    %104 = arith.divf %102, %103 : vector<16x1xf32>
    %105 = vector.broadcast %104 : vector<16x1xf32> to vector<16x32xf32>
    %106 = arith.subf %98, %105 : vector<16x32xf32>
    %107 = arith.mulf %106, %106 : vector<16x32xf32>
    %cst_53 = arith.constant dense<0.000000e+00> : vector<16xf32>
    %108 = vector.multi_reduction <add>, %107, %cst_53 [1] : vector<16x32xf32> to vector<16xf32>
    %109 = vector.shape_cast %108 : vector<16xf32> to vector<16x1xf32>
    %cst_54 = arith.constant 3.200000e+01 : f32
    %110 = vector.broadcast %cst_54 : f32 to vector<16x1xf32>
    %111 = arith.divf %109, %110 : vector<16x1xf32>
    %112 = vector.broadcast %104 : vector<16x1xf32> to vector<16x32xf32>
    %113 = arith.subf %98, %112 : vector<16x32xf32>
    %cst_55 = arith.constant 9.99999974E-6 : f32
    %114 = vector.broadcast %cst_55 : f32 to vector<16x1xf32>
    %115 = arith.addf %111, %114 : vector<16x1xf32>
    %116 = math.rsqrt %115 : vector<16x1xf32>
    %117 = vector.broadcast %116 : vector<16x1xf32> to vector<16x32xf32>
    %118 = arith.mulf %113, %117 : vector<16x32xf32>
    %119 = vector.broadcast %99 : vector<1x32xf32> to vector<16x32xf32>
    %120 = arith.mulf %118, %119 : vector<16x32xf32>
    %121 = vector.broadcast %100 : vector<1x32xf32> to vector<16x32xf32>
    %122 = arith.addf %120, %121 : vector<16x32xf32>
    %c0_56 = arith.constant 0 : index
    %c0_57 = arith.constant 0 : index
    %123 = vector.load %arg18[%c0_56, %c0_57] : memref<32x128xf32, #tpu.memory_space<vmem>>, vector<32x128xf32>
    %cst_58 = arith.constant dense<0.000000e+00> : vector<16x128xf32>
    %124 = tpu.matmul %122, %123, %cst_58 {dimension_numbers = #tpu.dot_dimension_numbers<[1], [0], [0], [1], [0, 0, 1, 1], [], []>} : vector<16x32xf32>, vector<32x128xf32>, vector<16x128xf32> -> vector<16x128xf32>
    %c0_59 = arith.constant 0 : index
    %c0_60 = arith.constant 0 : index
    %125 = vector.load %arg19[%c0_59, %c0_60] : memref<1x128xf32, #tpu.memory_space<vmem>>, vector<1x128xf32>
    %126 = vector.broadcast %125 : vector<1x128xf32> to vector<16x128xf32>
    %127 = arith.addf %124, %126 : vector<16x128xf32>
    %cst_61 = arith.constant 1.702000e+00 : f32
    %128 = vector.broadcast %cst_61 : f32 to vector<16x128xf32>
    %129 = arith.mulf %128, %127 : vector<16x128xf32>
    %130 = arith.negf %129 : vector<16x128xf32>
    %131 = math.exp %130 : vector<16x128xf32>
    %cst_62 = arith.constant 1.000000e+00 : f32
    %132 = vector.broadcast %cst_62 : f32 to vector<16x128xf32>
    %133 = arith.addf %132, %131 : vector<16x128xf32>
    %134 = arith.divf %132, %133 : vector<16x128xf32>
    %135 = arith.mulf %127, %134 : vector<16x128xf32>
    %c0_63 = arith.constant 0 : index
    %c0_64 = arith.constant 0 : index
    %136 = vector.load %arg20[%c0_63, %c0_64] : memref<128x32xf32, #tpu.memory_space<vmem>>, vector<128x32xf32>
    %cst_65 = arith.constant dense<0.000000e+00> : vector<16x32xf32>
    %137 = tpu.matmul %135, %136, %cst_65 {dimension_numbers = #tpu.dot_dimension_numbers<[1], [0], [0], [1], [0, 0, 1, 1], [], []>} : vector<16x128xf32>, vector<128x32xf32>, vector<16x32xf32> -> vector<16x32xf32>
    %c0_66 = arith.constant 0 : index
    %c0_67 = arith.constant 0 : index
    %138 = vector.load %arg21[%c0_66, %c0_67] : memref<1x32xf32, #tpu.memory_space<vmem>>, vector<1x32xf32>
    %139 = vector.broadcast %138 : vector<1x32xf32> to vector<16x32xf32>
    %140 = arith.addf %137, %139 : vector<16x32xf32>
    %141 = arith.addf %98, %140 : vector<16x32xf32>
    %142 = vector.shape_cast %141 : vector<16x32xf32> to vector<8x2x32xf32>
    %c0_68 = arith.constant 0 : index
    %c0_69 = arith.constant 0 : index
    %c0_70 = arith.constant 0 : index
    %143 = vector.load %arg22[%c0_68, %c0_69, %c0_70] : memref<8x2x32xf32, #tpu.memory_space<vmem>>, vector<8x2x32xf32>
    tpu.vector_store %arg22[%c0_68, %c0_69, %c0_70], %142 {strides = array<i32>} : memref<8x2x32xf32, #tpu.memory_space<vmem>>, vector<8x2x32xf32>,
    return
  }
  func.func @transform_0(%arg0: i32) -> (i32, i32, i32) {
    %c0_i32 = arith.constant 0 : i32
    %c0_i32_0 = arith.constant 0 : i32
    %c0_i32_1 = arith.constant 0 : i32
    return %c0_i32, %arg0, %c0_i32_0 : i32, i32, i32
  }
  func.func @transform_1(%arg0: i32) -> (i32, i32, i32) {
    %c0_i32 = arith.constant 0 : i32
    %c0_i32_0 = arith.constant 0 : i32
    %c0_i32_1 = arith.constant 0 : i32
    return %c0_i32, %arg0, %c0_i32_0 : i32, i32, i32
  }
  func.func @transform_2(%arg0: i32) -> (i32, i32, i32) {
    %c0_i32 = arith.constant 0 : i32
    %c0_i32_0 = arith.constant 0 : i32
    %c0_i32_1 = arith.constant 0 : i32
    return %c0_i32, %arg0, %c0_i32_0 : i32, i32, i32
  }
  func.func @transform_3(%arg0: i32) -> (i32, i32, i32) {
    %c0_i32 = arith.constant 0 : i32
    %c0_i32_0 = arith.constant 0 : i32
    %c0_i32_1 = arith.constant 0 : i32
    return %c0_i32, %arg0, %c0_i32_0 : i32, i32, i32
  }
  func.func @transform_4(%arg0: i32) -> (i32, i32, i32) {
    %c0_i32 = arith.constant 0 : i32
    %c0_i32_0 = arith.constant 0 : i32
    %c0_i32_1 = arith.constant 0 : i32
    return %c0_i32, %arg0, %c0_i32_0 : i32, i32, i32
  }
  func.func @transform_5(%arg0: i32) -> (i32, i32) {
    %c0_i32 = arith.constant 0 : i32
    %c0_i32_0 = arith.constant 0 : i32
    %c0_i32_1 = arith.constant 0 : i32
    return %c0_i32, %c0_i32_0 : i32, i32
  }
  func.func @transform_6(%arg0: i32) -> (i32, i32) {
    %c0_i32 = arith.constant 0 : i32
    %c0_i32_0 = arith.constant 0 : i32
    %c0_i32_1 = arith.constant 0 : i32
    return %c0_i32, %c0_i32_0 : i32, i32
  }
  func.func @transform_7(%arg0: i32) -> (i32, i32) {
    %c0_i32 = arith.constant 0 : i32
    %c0_i32_0 = arith.constant 0 : i32
    %c0_i32_1 = arith.constant 0 : i32
    return %c0_i32, %c0_i32_0 : i32, i32
  }
  func.func @transform_8(%arg0: i32) -> (i32, i32) {
    %c0_i32 = arith.constant 0 : i32
    %c0_i32_0 = arith.constant 0 : i32
    %c0_i32_1 = arith.constant 0 : i32
    return %c0_i32, %c0_i32_0 : i32, i32
  }
  func.func @transform_9(%arg0: i32) -> (i32, i32) {
    %c0_i32 = arith.constant 0 : i32
    %c0_i32_0 = arith.constant 0 : i32
    %c0_i32_1 = arith.constant 0 : i32
    return %c0_i32, %c0_i32_0 : i32, i32
  }
  func.func @transform_10(%arg0: i32) -> (i32, i32) {
    %c0_i32 = arith.constant 0 : i32
    %c0_i32_0 = arith.constant 0 : i32
    %c0_i32_1 = arith.constant 0 : i32
    return %c0_i32, %c0_i32_0 : i32, i32
  }
  func.func @transform_11(%arg0: i32) -> (i32, i32) {
    %c0_i32 = arith.constant 0 : i32
    %c0_i32_0 = arith.constant 0 : i32
    %c0_i32_1 = arith.constant 0 : i32
    return %c0_i32, %c0_i32_0 : i32, i32
  }
  func.func @transform_12(%arg0: i32) -> (i32, i32) {
    %c0_i32 = arith.constant 0 : i32
    %c0_i32_0 = arith.constant 0 : i32
    %c0_i32_1 = arith.constant 0 : i32
    return %c0_i32, %c0_i32_0 : i32, i32
  }
  func.func @transform_13(%arg0: i32) -> (i32, i32) {
    %c0_i32 = arith.constant 0 : i32
    %c0_i32_0 = arith.constant 0 : i32
    %c0_i32_1 = arith.constant 0 : i32
    return %c0_i32, %c0_i32_0 : i32, i32
  }
  func.func @transform_14(%arg0: i32) -> (i32, i32) {
    %c0_i32 = arith.constant 0 : i32
    %c0_i32_0 = arith.constant 0 : i32
    %c0_i32_1 = arith.constant 0 : i32
    return %c0_i32, %c0_i32_0 : i32, i32
  }
  func.func @transform_15(%arg0: i32) -> (i32, i32) {
    %c0_i32 = arith.constant 0 : i32
    %c0_i32_0 = arith.constant 0 : i32
    %c0_i32_1 = arith.constant 0 : i32
    return %c0_i32, %c0_i32_0 : i32, i32
  }
  func.func @transform_16(%arg0: i32) -> (i32, i32) {
    %c0_i32 = arith.constant 0 : i32
    %c0_i32_0 = arith.constant 0 : i32
    %c0_i32_1 = arith.constant 0 : i32
    return %c0_i32, %c0_i32_0 : i32, i32
  }
  func.func @transform_17(%arg0: i32) -> (i32, i32) {
    %c0_i32 = arith.constant 0 : i32
    %c0_i32_0 = arith.constant 0 : i32
    %c0_i32_1 = arith.constant 0 : i32
    return %c0_i32, %c0_i32_0 : i32, i32
  }
  func.func @transform_18(%arg0: i32) -> (i32, i32) {
    %c0_i32 = arith.constant 0 : i32
    %c0_i32_0 = arith.constant 0 : i32
    %c0_i32_1 = arith.constant 0 : i32
    return %c0_i32, %c0_i32_0 : i32, i32
  }
  func.func @transform_19(%arg0: i32) -> (i32, i32) {
    %c0_i32 = arith.constant 0 : i32
    %c0_i32_0 = arith.constant 0 : i32
    %c0_i32_1 = arith.constant 0 : i32
    return %c0_i32, %c0_i32_0 : i32, i32
  }
  func.func @transform_20(%arg0: i32) -> (i32, i32) {
    %c0_i32 = arith.constant 0 : i32
    %c0_i32_0 = arith.constant 0 : i32
    %c0_i32_1 = arith.constant 0 : i32
    return %c0_i32, %c0_i32_0 : i32, i32
  }
  func.func @transform_21(%arg0: i32) -> (i32, i32, i32) {
    %c0_i32 = arith.constant 0 : i32
    %c0_i32_0 = arith.constant 0 : i32
    %c0_i32_1 = arith.constant 0 : i32
    return %c0_i32, %arg0, %c0_i32_0 : i32, i32, i32
  }
}

</mosaic_0001>

<llo_original>
// kernel: tpu_custom_call.1
$region0: #{tpu_custom_call.1}
  #allocation0 [shape = 'u32[]', space=smem, size = 0x4, offset = 0x4, fixed_abs, tag = 'smem constant byte address 0x4 - core index']
  #allocation1 [shape = 'u32[72,128]{1,0:T(1,128)}', space=vmem, size = 0x9000, scoped, tag = 'internal scratch']
  %s0 = inlined_call_operand.hbm [shape: f32[8,2,32], index: 0, kind: input, shape index: {}]
  %s1 = inlined_call_operand.vmem [shape: f32[16,2,32], index: 1, kind: input, shape index: {}]
  %s2 = inlined_call_operand.vmem [shape: f32[16,2,32], index: 2, kind: input, shape index: {}]
  %s3 = inlined_call_operand.hbm [shape: f32[8,2,32], index: 3, kind: input, shape index: {}]
  %s4 = inlined_call_operand.vmem [shape: f32[16,2,32], index: 4, kind: input, shape index: {}]
  %s5 = inlined_call_operand.vmem [shape: f32[1,32], index: 5, kind: input, shape index: {}]
  %s6 = inlined_call_operand.vmem [shape: f32[1,32], index: 6, kind: input, shape index: {}]
  %s7 = inlined_call_operand.vmem [shape: f32[32,32], index: 7, kind: input, shape index: {}]
  %s8 = inlined_call_operand.vmem [shape: f32[1,32], index: 8, kind: input, shape index: {}]
  %s9 = inlined_call_operand.vmem [shape: f32[32,32], index: 9, kind: input, shape index: {}]
  %s10 = inlined_call_operand.vmem [shape: f32[1,32], index: 10, kind: input, shape index: {}]
  %s11 = inlined_call_operand.hbm [shape: f32[32,32], index: 11, kind: input, shape index: {}]
  %s12 = inlined_call_operand.vmem [shape: f32[1,32], index: 12, kind: input, shape index: {}]
  %s13 = inlined_call_operand.hbm [shape: f32[32,32], index: 13, kind: input, shape index: {}]
  %s14 = inlined_call_operand.vmem [shape: f32[1,32], index: 14, kind: input, shape index: {}]
  %s15 = inlined_call_operand.vmem [shape: f32[1,32], index: 15, kind: input, shape index: {}]
  %s16 = inlined_call_operand.vmem [shape: f32[1,32], index: 16, kind: input, shape index: {}]
  %s17 = inlined_call_operand.hbm [shape: f32[32,128], index: 17, kind: input, shape index: {}]
  %s18 = inlined_call_operand.vmem [shape: f32[1,128], index: 18, kind: input, shape index: {}]
  %s19 = inlined_call_operand.vmem [shape: f32[128,32], index: 19, kind: input, shape index: {}]
  %s20 = inlined_call_operand.vmem [shape: f32[1,32], index: 20, kind: input, shape index: {}]
  %s21 = inlined_call_operand.hbm [shape: f32[8,2,32], index: 21, kind: output, shape index: {}]
  %s22 = sld [smem:[#allocation0]]
  $region114: #{tpu_custom_call.1} parent=0
    _
  %s24 = ssub.s32 1, %s22
  %s25 = scalar_select 0, %s24, %s22
  $region1: #{tpu_custom_call.1} parent=0
    #allocation2 [shape = 'u8[8192]{0}', space=vmem, size = 0x2000, scoped, tag = 'input window, operand 0, single buffered']
    #allocation3 [shape = 's32[1]{0}', space=sflag, size = 0x4, scoped, tag = 'scoped memory for tpu_custom_call.1']
    #allocation4 [shape = 's32[1]{0}', space=sflag, size = 0x4, scoped, tag = 'scoped memory for tpu_custom_call.1']
    #allocation5 [shape = 'u8[8192]{0}', space=vmem, size = 0x2000, scoped, tag = 'input window, operand 3, single buffered']
    #allocation6 [shape = 's32[1]{0}', space=sflag, size = 0x4, scoped, tag = 'scoped memory for tpu_custom_call.1']
    #allocation7 [shape = 'u8[16384]{0}', space=vmem, size = 0x4000, scoped, tag = 'input window, operand 11, single buffered']
    #allocation8 [shape = 'u8[16384]{0}', space=vmem, size = 0x4000, scoped, tag = 'input window, operand 13, single buffered']
    #allocation9 [shape = 's32[1]{0}', space=sflag, size = 0x4, scoped, tag = 'scoped memory for tpu_custom_call.1']
    #allocation10 [shape = 'u8[16384]{0}', space=vmem, size = 0x4000, scoped, tag = 'input window, operand 17, single buffered']
    #allocation11 [shape = 'u8[8192]{0}', space=vmem, size = 0x2000, scoped, tag = 'output window, operand 0, single buffered']
    %26 = vsyncpa [#allocation3], 0
    %27 = vsyncpa [#allocation6], 0
    %28 = vsyncpa [#allocation9], 0
    %29 = vsyncpa [#allocation4], 0
    // Predicated region
    $region2: #{tpu_custom_call.1} parent=1 // pred_check
      _
    $region3: #{tpu_custom_call.1} parent=1 // pred_check_branch
      %31 = sbr.rel (0) target = $region5
    $region4: #{tpu_custom_call.1} parent=1 // pred_region
      %33 = vsyncadd [#allocation3], 0
      %s34 = sshll.u32 %s0, 4
      %s35 = int_to_ptr.hbm [resolvable:$true] %s34
      %s36 = sshll.u32 [#allocation2], 4
      %s37 = int_to_ptr.vmem [resolvable:$true] %s36
      %42 = dma.hbm_to_vmem [thread:$0]  %s35, 256, %s37, [#allocation3], 32, 32, 2
    $region5: #{tpu_custom_call.1} parent=1 // pred_fallthru
      _
    // Predicated region
    $region6: #{tpu_custom_call.1} parent=1 // pred_check
      _
    $region7: #{tpu_custom_call.1} parent=1 // pred_check_branch
      %44 = sbr.rel (0) target = $region9
    $region8: #{tpu_custom_call.1} parent=1 // pred_region
      _
    $region9: #{tpu_custom_call.1} parent=1 // pred_fallthru
      _
    // Predicated region
    $region10: #{tpu_custom_call.1} parent=1 // pred_check
      _
    $region11: #{tpu_custom_call.1} parent=1 // pred_check_branch
      %46 = sbr.rel (0) target = $region13
    $region12: #{tpu_custom_call.1} parent=1 // pred_region
      _
    $region13: #{tpu_custom_call.1} parent=1 // pred_fallthru
      _
    // Predicated region
    $region14: #{tpu_custom_call.1} parent=1 // pred_check
      _
    $region15: #{tpu_custom_call.1} parent=1 // pred_check_branch
      %48 = sbr.rel (0) target = $region17
    $region16: #{tpu_custom_call.1} parent=1 // pred_region
      %50 = vsyncadd [#allocation6], 0
      %s51 = sshll.u32 %s3, 4
      %s52 = int_to_ptr.hbm [resolvable:$true] %s51
      %s53 = sshll.u32 [#allocation5], 4
      %s54 = int_to_ptr.vmem [resolvable:$true] %s53
      %59 = dma.hbm_to_vmem [thread:$0]  %s52, 256, %s54, [#allocation6], 32, 32, 2
    $region17: #{tpu_custom_call.1} parent=1 // pred_fallthru
      _
    // Predicated region
    $region18: #{tpu_custom_call.1} parent=1 // pred_check
      _
    $region19: #{tpu_custom_call.1} parent=1 // pred_check_branch
      %61 = sbr.rel (0) target = $region21
    $region20: #{tpu_custom_call.1} parent=1 // pred_region
      _
    $region21: #{tpu_custom_call.1} parent=1 // pred_fallthru
      _
    // Predicated region
    $region22: #{tpu_custom_call.1} parent=1 // pred_check
      _
    $region23: #{tpu_custom_call.1} parent=1 // pred_check_branch
      %63 = sbr.rel (0) target = $region25
    $region24: #{tpu_custom_call.1} parent=1 // pred_region
      _
    $region25: #{tpu_custom_call.1} parent=1 // pred_fallthru
      _
    // Predicated region
    $region26: #{tpu_custom_call.1} parent=1 // pred_check
      _
    $region27: #{tpu_custom_call.1} parent=1 // pred_check_branch
      %65 = sbr.rel (0) target = $region29
    $region28: #{tpu_custom_call.1} parent=1 // pred_region
      _
    $region29: #{tpu_custom_call.1} parent=1 // pred_fallthru
      _
    // Predicated region
    $region30: #{tpu_custom_call.1} parent=1 // pred_check
      _
    $region31: #{tpu_custom_call.1} parent=1 // pred_check_branch
      %67 = sbr.rel (0) target = $region33
    $region32: #{tpu_custom_call.1} parent=1 // pred_region
      _
    $region33: #{tpu_custom_call.1} parent=1 // pred_fallthru
      _
    // Predicated region
    $region34: #{tpu_custom_call.1} parent=1 // pred_check
      _
    $region35: #{tpu_custom_call.1} parent=1 // pred_check_branch
      %69 = sbr.rel (0) target = $region37
    $region36: #{tpu_custom_call.1} parent=1 // pred_region
      _
    $region37: #{tpu_custom_call.1} parent=1 // pred_fallthru
      _
    // Predicated region
    $region38: #{tpu_custom_call.1} parent=1 // pred_check
      _
    $region39: #{tpu_custom_call.1} parent=1 // pred_check_branch
      %71 = sbr.rel (0) target = $region41
    $region40: #{tpu_custom_call.1} parent=1 // pred_region
      _
    $region41: #{tpu_custom_call.1} parent=1 // pred_fallthru
      _
    // Predicated region
    $region42: #{tpu_custom_call.1} parent=1 // pred_check
      _
    $region43: #{tpu_custom_call.1} parent=1 // pred_check_branch
      %73 = sbr.rel (0) target = $region45
    $region44: #{tpu_custom_call.1} parent=1 // pred_region
      _
    $region45: #{tpu_custom_call.1} parent=1 // pred_fallthru
      _
    // Predicated region
    $region46: #{tpu_custom_call.1} parent=1 // pred_check
      _
    $region47: #{tpu_custom_call.1} parent=1 // pred_check_branch
      %75 = sbr.rel (0) target = $region49
    $region48: #{tpu_custom_call.1} parent=1 // pred_region
      %77 = vsyncadd [#allocation6], 0
      %s78 = sshll.u32 %s11, 4
      %s79 = int_to_ptr.hbm [resolvable:$true] %s78
      %s80 = sshll.u32 [#allocation7], 4
      %s81 = int_to_ptr.vmem [resolvable:$true] %s80
      %86 = dma.hbm_to_vmem [thread:$0]  %s79, 512, %s81, [#allocation6], 128, 128, 8
    $region49: #{tpu_custom_call.1} parent=1 // pred_fallthru
      _
    // Predicated region
    $region50: #{tpu_custom_call.1} parent=1 // pred_check
      _
    $region51: #{tpu_custom_call.1} parent=1 // pred_check_branch
      %88 = sbr.rel (0) target = $region53
    $region52: #{tpu_custom_call.1} parent=1 // pred_region
      _
    $region53: #{tpu_custom_call.1} parent=1 // pred_fallthru
      _
    // Predicated region
    $region54: #{tpu_custom_call.1} parent=1 // pred_check
      _
    $region55: #{tpu_custom_call.1} parent=1 // pred_check_branch
      %90 = sbr.rel (0) target = $region57
    $region56: #{tpu_custom_call.1} parent=1 // pred_region
      %92 = vsyncadd [#allocation9], 0
      %s93 = sshll.u32 %s13, 4
      %s94 = int_to_ptr.hbm [resolvable:$true] %s93
      %s95 = sshll.u32 [#allocation8], 4
      %s96 = int_to_ptr.vmem [resolvable:$true] %s95
      %101 = dma.hbm_to_vmem [thread:$0]  %s94, 512, %s96, [#allocation9], 128, 128, 8
    $region57: #{tpu_custom_call.1} parent=1 // pred_fallthru
      _
    // Predicated region
    $region58: #{tpu_custom_call.1} parent=1 // pred_check
      _
    $region59: #{tpu_custom_call.1} parent=1 // pred_check_branch
      %103 = sbr.rel (0) target = $region61
    $region60: #{tpu_custom_call.1} parent=1 // pred_region
      _
    $region61: #{tpu_custom_call.1} parent=1 // pred_fallthru
      _
    // Predicated region
    $region62: #{tpu_custom_call.1} parent=1 // pred_check
      _
    $region63: #{tpu_custom_call.1} parent=1 // pred_check_branch
      %105 = sbr.rel (0) target = $region65
    $region64: #{tpu_custom_call.1} parent=1 // pred_region
      _
    $region65: #{tpu_custom_call.1} parent=1 // pred_fallthru
      _
    // Predicated region
    $region66: #{tpu_custom_call.1} parent=1 // pred_check
      _
    $region67: #{tpu_custom_call.1} parent=1 // pred_check_branch
      %107 = sbr.rel (0) target = $region69
    $region68: #{tpu_custom_call.1} parent=1 // pred_region
      _
    $region69: #{tpu_custom_call.1} parent=1 // pred_fallthru
      _
    // Predicated region
    $region70: #{tpu_custom_call.1} parent=1 // pred_check
      _
    $region71: #{tpu_custom_call.1} parent=1 // pred_check_branch
      %109 = sbr.rel (0) target = $region73
    $region72: #{tpu_custom_call.1} parent=1 // pred_region
      %111 = vsyncadd [#allocation9], 0
      %s112 = sshll.u32 %s17, 4
      %s113 = int_to_ptr.hbm [resolvable:$true] %s112
      %s114 = sshll.u32 [#allocation10], 4
      %s115 = int_to_ptr.vmem [resolvable:$true] %s114
      %120 = dma.hbm_to_vmem [thread:$0]  %s113, 512, %s115, [#allocation9], 128, 128, 8
    $region73: #{tpu_custom_call.1} parent=1 // pred_fallthru
      _
    // Predicated region
    $region74: #{tpu_custom_call.1} parent=1 // pred_check
      _
    $region75: #{tpu_custom_call.1} parent=1 // pred_check_branch
      %122 = sbr.rel (0) target = $region77
    $region76: #{tpu_custom_call.1} parent=1 // pred_region
      _
    $region77: #{tpu_custom_call.1} parent=1 // pred_fallthru
      _
    // Predicated region
    $region78: #{tpu_custom_call.1} parent=1 // pred_check
      _
    $region79: #{tpu_custom_call.1} parent=1 // pred_check_branch
      %124 = sbr.rel (0) target = $region81
    $region80: #{tpu_custom_call.1} parent=1 // pred_region
      _
    $region81: #{tpu_custom_call.1} parent=1 // pred_fallthru
      _
    // Predicated region
    $region82: #{tpu_custom_call.1} parent=1 // pred_check
      _
    $region83: #{tpu_custom_call.1} parent=1 // pred_check_branch
      %126 = sbr.rel (0) target = $region85
    $region84: #{tpu_custom_call.1} parent=1 // pred_region
      _
    $region85: #{tpu_custom_call.1} parent=1 // pred_fallthru
      _
    // Predicated region
    $region86: #{tpu_custom_call.1} parent=1 // pred_check
      _
    $region87: #{tpu_custom_call.1} parent=1 // pred_check_branch
      %128 = sbr.rel (0) target = $region89
    $region88: #{tpu_custom_call.1} parent=1 // pred_region
      %130 = dma.done [#allocation3], 256
    $region89: #{tpu_custom_call.1} parent=1 // pred_fallthru
      _
    // Predicated region
    $region90: #{tpu_custom_call.1} parent=1 // pred_check
      _
    $region91: #{tpu_custom_call.1} parent=1 // pred_check_branch
      %132 = sbr.rel (0) target = $region93
    $region92: #{tpu_custom_call.1} parent=1 // pred_region
      %134 = dma.done [#allocation6], 256
    $region93: #{tpu_custom_call.1} parent=1 // pred_fallthru
      _
    // Predicated region
    $region94: #{tpu_custom_call.1} parent=1 // pred_check
      _
    $region95: #{tpu_custom_call.1} parent=1 // pred_check_branch
      %136 = sbr.rel (0) target = $region97
    $region96: #{tpu_custom_call.1} parent=1 // pred_region
      %138 = dma.done [#allocation6], 512
    $region97: #{tpu_custom_call.1} parent=1 // pred_fallthru
      _
    // Predicated region
    $region98: #{tpu_custom_call.1} parent=1 // pred_check
      _
    $region99: #{tpu_custom_call.1} parent=1 // pred_check_branch
      %140 = sbr.rel (0) target = $region101
    $region100: #{tpu_custom_call.1} parent=1 // pred_region
      %142 = dma.done [#allocation9], 512
    $region101: #{tpu_custom_call.1} parent=1 // pred_fallthru
      _
    // Predicated region
    $region102: #{tpu_custom_call.1} parent=1 // pred_check
      _
    $region103: #{tpu_custom_call.1} parent=1 // pred_check_branch
      %144 = sbr.rel (0) target = $region105
    $region104: #{tpu_custom_call.1} parent=1 // pred_region
      %146 = dma.done [#allocation9], 512
    $region105: #{tpu_custom_call.1} parent=1 // pred_fallthru
      _
    %v147 = vld [vmem:[#allocation2] sm:$0x3]
    %v148 = vld [vmem:[#allocation2 + $0x2] sm:$0x3]
    %v149 = vld [vmem:[#allocation2 + $0x4] sm:$0x3]
    %v150 = vld [vmem:[#allocation2 + $0x6] sm:$0x3]
    %v151 = vld [vmem:[#allocation2 + $0x8] sm:$0x3]
    %v152 = vld [vmem:[#allocation2 + $0xa] sm:$0x3]
    %v153 = vld [vmem:[#allocation2 + $0xc] sm:$0x3]
    %v154 = vld [vmem:[#allocation2 + $0xe] sm:$0x3]
    %v155 = vld [vmem:[%s1] sm:$0x3]
    %v156 = vld [vmem:[%s1 + $0x2] sm:$0x3]
    %v157 = vld [vmem:[%s1 + $0x4] sm:$0x3]
    %v158 = vld [vmem:[%s1 + $0x6] sm:$0x3]
    %v159 = vld [vmem:[%s1 + $0x8] sm:$0x3]
    %v160 = vld [vmem:[%s1 + $0xa] sm:$0x3]
    %v161 = vld [vmem:[%s1 + $0xc] sm:$0x3]
    %v162 = vld [vmem:[%s1 + $0xe] sm:$0x3]
    %v163 = vld [vmem:[%s1 + $0x10] sm:$0x3]
    %v164 = vld [vmem:[%s1 + $0x12] sm:$0x3]
    %v165 = vld [vmem:[%s1 + $0x14] sm:$0x3]
    %v166 = vld [vmem:[%s1 + $0x16] sm:$0x3]
    %v167 = vld [vmem:[%s1 + $0x18] sm:$0x3]
    %v168 = vld [vmem:[%s1 + $0x1a] sm:$0x3]
    %v169 = vld [vmem:[%s1 + $0x1c] sm:$0x3]
    %v170 = vld [vmem:[%s1 + $0x1e] sm:$0x3]
    %v171 = vld [vmem:[%s2] sm:$0x3]
    %v172 = vld [vmem:[%s2 + $0x2] sm:$0x3]
    %v173 = vld [vmem:[%s2 + $0x4] sm:$0x3]
    %v174 = vld [vmem:[%s2 + $0x6] sm:$0x3]
    %v175 = vld [vmem:[%s2 + $0x8] sm:$0x3]
    %v176 = vld [vmem:[%s2 + $0xa] sm:$0x3]
    %v177 = vld [vmem:[%s2 + $0xc] sm:$0x3]
    %v178 = vld [vmem:[%s2 + $0xe] sm:$0x3]
    %v179 = vld [vmem:[%s2 + $0x10] sm:$0x3]
    %v180 = vld [vmem:[%s2 + $0x12] sm:$0x3]
    %v181 = vld [vmem:[%s2 + $0x14] sm:$0x3]
    %v182 = vld [vmem:[%s2 + $0x16] sm:$0x3]
    %v183 = vld [vmem:[%s2 + $0x18] sm:$0x3]
    %v184 = vld [vmem:[%s2 + $0x1a] sm:$0x3]
    %v185 = vld [vmem:[%s2 + $0x1c] sm:$0x3]
    %v186 = vld [vmem:[%s2 + $0x1e] sm:$0x3]
    %v187 = vld [vmem:[%s5] sm:$0x1]
    %v188 = vld [vmem:[%s6] sm:$0x1]
    %197 = vst [vmem:[#allocation1] ss:$4 sm:$0xff] %v147
    %s198 = scalar_lea.vmem [#allocation1], 1
    %199 = vst [vmem:[%s198] ss:$4 sm:$0xff] %v148
    %s200 = scalar_lea.vmem [#allocation1], 2
    %201 = vst [vmem:[%s200] ss:$4 sm:$0xff] %v149
    %s202 = scalar_lea.vmem [#allocation1], 3
    %203 = vst [vmem:[%s202] ss:$4 sm:$0xff] %v150
    %s204 = scalar_lea.vmem [#allocation1], 32
    %205 = vst [vmem:[%s204] ss:$4 sm:$0xff] %v151
    %s206 = scalar_lea.vmem [#allocation1], 33
    %207 = vst [vmem:[%s206] ss:$4 sm:$0xff] %v152
    %s208 = scalar_lea.vmem [#allocation1], 34
    %209 = vst [vmem:[%s208] ss:$4 sm:$0xff] %v153
    %s210 = scalar_lea.vmem [#allocation1], 35
    %211 = vst [vmem:[%s210] ss:$4 sm:$0xff] %v154
    %v212 = vld.sshfl [vmem:[#allocation1] sm:$0xff pattern:$0x73625140]
    %v213 = vld.sshfl [vmem:[#allocation1 + $0x20] sm:$0xff pattern:$0x73625140]
    %vm216 = vcmask 261120
    %v217 = vsel %vm216, %v212, 0.0
    %218 = vadd.xlane.f32.xlu0 %v217
    %v219 = vpop.xlane.xlu0 %218
    %v220 = vsel %vm216, %v213, 0.0
    %221 = vadd.xlane.f32.xlu0 %v220
    %v222 = vpop.xlane.xlu0 %221
    %v223 = vrcp.pop 32.0
    %v224 = vmul.f32 32.0, %v223
    %v225 = vsub.f32 1.0, %v224
    %v226 = vmul.f32 %v223, %v225
    %v227 = vadd.f32 %v223, %v226
    %vm228 = vweird.f32 %v223
    %v229 = vsel %vm228, %v223, %v227
    %v230 = vmul.f32 %v219, %v229
    %v231 = vmul.f32 %v222, %v229
    %v235 = vunpack.c.l.s4 269488144
    %v236 = vunpack.c.0.s8 %v235
    %v237 = vperm.slane %v230, %v236
    %v239 = vunpack.c.l.s4 842150450
    %v240 = vunpack.c.0.s8 %v239
    %v241 = vperm.slane %v230, %v240
    %v243 = vunpack.c.l.s4 1414812756
    %v244 = vunpack.c.0.s8 %v243
    %v245 = vperm.slane %v230, %v244
    %v247 = vunpack.c.l.s4 1987475062
    %v248 = vunpack.c.0.s8 %v247
    %v249 = vperm.slane %v230, %v248
    %v251 = vunpack.c.l.s4 269488144
    %v252 = vunpack.c.0.s8 %v251
    %v253 = vperm.slane %v231, %v252
    %v255 = vunpack.c.l.s4 842150450
    %v256 = vunpack.c.0.s8 %v255
    %v257 = vperm.slane %v231, %v256
    %v259 = vunpack.c.l.s4 1414812756
    %v260 = vunpack.c.0.s8 %v259
    %v261 = vperm.slane %v231, %v260
    %v263 = vunpack.c.l.s4 1987475062
    %v264 = vunpack.c.0.s8 %v263
    %v265 = vperm.slane %v231, %v264
    %v274 = vsub.f32 %v147, %v237
    %v275 = vsub.f32 %v148, %v241
    %v276 = vsub.f32 %v149, %v245
    %v277 = vsub.f32 %v150, %v249
    %v278 = vsub.f32 %v151, %v253
    %v279 = vsub.f32 %v152, %v257
    %v280 = vsub.f32 %v153, %v261
    %v281 = vsub.f32 %v154, %v265
    %v282 = vmul.f32 %v274, %v274
    %v283 = vmul.f32 %v275, %v275
    %v284 = vmul.f32 %v276, %v276
    %v285 = vmul.f32 %v277, %v277
    %v286 = vmul.f32 %v278, %v278
    %v287 = vmul.f32 %v279, %v279
    %v288 = vmul.f32 %v280, %v280
    %v289 = vmul.f32 %v281, %v281
    %298 = vst [vmem:[#allocation1] ss:$4 sm:$0xff] %v282
    %s299 = scalar_lea.vmem [#allocation1], 1
    %300 = vst [vmem:[%s299] ss:$4 sm:$0xff] %v283
    %s301 = scalar_lea.vmem [#allocation1], 2
    %302 = vst [vmem:[%s301] ss:$4 sm:$0xff] %v284
    %s303 = scalar_lea.vmem [#allocation1], 3
    %304 = vst [vmem:[%s303] ss:$4 sm:$0xff] %v285
    %s305 = scalar_lea.vmem [#allocation1], 32
    %306 = vst [vmem:[%s305] ss:$4 sm:$0xff] %v286
    %s307 = scalar_lea.vmem [#allocation1], 33
    %308 = vst [vmem:[%s307] ss:$4 sm:$0xff] %v287
    %s309 = scalar_lea.vmem [#allocation1], 34
    %310 = vst [vmem:[%s309] ss:$4 sm:$0xff] %v288
    %s311 = scalar_lea.vmem [#allocation1], 35
    %312 = vst [vmem:[%s311] ss:$4 sm:$0xff] %v289
    %v313 = vld.sshfl [vmem:[#allocation1] sm:$0xff pattern:$0x73625140]
    %v314 = vld.sshfl [vmem:[#allocation1 + $0x20] sm:$0xff pattern:$0x73625140]
    %v317 = vsel %vm216, %v313, 0.0
    %318 = vadd.xlane.f32.xlu0 %v317
    %v319 = vpop.xlane.xlu0 %318
    %v320 = vsel %vm216, %v314, 0.0
    %321 = vadd.xlane.f32.xlu0 %v320
    %v322 = vpop.xlane.xlu0 %321
    %v323 = vmul.f32 %v319, %v229
    %v324 = vmul.f32 %v322, %v229
    %v325 = vadd.f32 %v323, 1e-05
    %v326 = vadd.f32 %v324, 1e-05
    %v327 = vrsqrt.pop %v325
    %v328 = vmul.f32 %v327, %v325
    %v329 = vmul.f32 %v328, %v327
    %v330 = vmul.f32 0.5, %v329
    %v331 = vsub.f32 1.5, %v330
    %v332 = vmul.f32 %v327, %v331
    %vm333 = vweird.f32 %v325
    %vm334 = vweird.f32 %v327
    %vm335 = vmor %vm333, %vm334
    %v336 = vsel %vm335, %v327, %v332
    %v337 = vrsqrt.pop %v326
    %v338 = vmul.f32 %v337, %v326
    %v339 = vmul.f32 %v338, %v337
    %v340 = vmul.f32 0.5, %v339
    %v341 = vsub.f32 1.5, %v340
    %v342 = vmul.f32 %v337, %v341
    %vm343 = vweird.f32 %v326
    %vm344 = vweird.f32 %v337
    %vm345 = vmor %vm343, %vm344
    %v346 = vsel %vm345, %v337, %v342
    %v350 = vunpack.c.l.s4 269488144
    %v351 = vunpack.c.0.s8 %v350
    %v352 = vperm.slane %v336, %v351
    %v354 = vunpack.c.l.s4 842150450
    %v355 = vunpack.c.0.s8 %v354
    %v356 = vperm.slane %v336, %v355
    %v358 = vunpack.c.l.s4 1414812756
    %v359 = vunpack.c.0.s8 %v358
    %v360 = vperm.slane %v336, %v359
    %v362 = vunpack.c.l.s4 1987475062
    %v363 = vunpack.c.0.s8 %v362
    %v364 = vperm.slane %v336, %v363
    %v366 = vunpack.c.l.s4 269488144
    %v367 = vunpack.c.0.s8 %v366
    %v368 = vperm.slane %v346, %v367
    %v370 = vunpack.c.l.s4 842150450
    %v371 = vunpack.c.0.s8 %v370
    %v372 = vperm.slane %v346, %v371
    %v374 = vunpack.c.l.s4 1414812756
    %v375 = vunpack.c.0.s8 %v374
    %v376 = vperm.slane %v346, %v375
    %v378 = vunpack.c.l.s4 1987475062
    %v379 = vunpack.c.0.s8 %v378
    %v380 = vperm.slane %v346, %v379
    %v389 = vmul.f32 %v274, %v352
    %v390 = vmul.f32 %v275, %v356
    %v391 = vmul.f32 %v276, %v360
    %v392 = vmul.f32 %v277, %v364
    %v393 = vmul.f32 %v278, %v368
    %v394 = vmul.f32 %v279, %v372
    %v395 = vmul.f32 %v280, %v376
    %v396 = vmul.f32 %v281, %v380
    %v398 = vperm.slane %v187, 0
    %v400 = vrot.slane %v398, 2
    %v401 = vrot.slane %v398, 4
    %v402 = vrot.slane %v398, 6
    %v406 = vmul.f32 %v389, %v398
    %v407 = vmul.f32 %v390, %v400
    %v408 = vmul.f32 %v391, %v401
    %v409 = vmul.f32 %v392, %v402
    %v410 = vmul.f32 %v393, %v398
    %v411 = vmul.f32 %v394, %v400
    %v412 = vmul.f32 %v395, %v401
    %v413 = vmul.f32 %v396, %v402
    %v415 = vperm.slane %v188, 0
    %v417 = vrot.slane %v415, 2
    %v418 = vrot.slane %v415, 4
    %v419 = vrot.slane %v415, 6
    %v423 = vadd.f32 %v406, %v415
    %v424 = vadd.f32 %v407, %v417
    %v425 = vadd.f32 %v408, %v418
    %v426 = vadd.f32 %v409, %v419
    %v427 = vadd.f32 %v410, %v415
    %v428 = vadd.f32 %v411, %v417
    %v429 = vadd.f32 %v412, %v418
    %v430 = vadd.f32 %v413, %v419
    %v431 = vld [vmem:[#allocation5] sm:$0x3]
    %v432 = vld [vmem:[#allocation5 + $0x2] sm:$0x3]
    %v433 = vld [vmem:[#allocation5 + $0x4] sm:$0x3]
    %v434 = vld [vmem:[#allocation5 + $0x6] sm:$0x3]
    %v435 = vld [vmem:[#allocation5 + $0x8] sm:$0x3]
    %v436 = vld [vmem:[#allocation5 + $0xa] sm:$0x3]
    %v437 = vld [vmem:[#allocation5 + $0xc] sm:$0x3]
    %v438 = vld [vmem:[#allocation5 + $0xe] sm:$0x3]
    %v439 = vadd.f32 %v423, %v431
    %v440 = vadd.f32 %v424, %v432
    %v441 = vadd.f32 %v425, %v433
    %v442 = vadd.f32 %v426, %v434
    %v443 = vadd.f32 %v427, %v435
    %v444 = vadd.f32 %v428, %v436
    %v445 = vadd.f32 %v429, %v437
    %v446 = vadd.f32 %v430, %v438
    %v447 = vld [vmem:[%s4] sm:$0x3]
    %v448 = vld [vmem:[%s4 + $0x2] sm:$0x3]
    %v449 = vld [vmem:[%s4 + $0x4] sm:$0x3]
    %v450 = vld [vmem:[%s4 + $0x6] sm:$0x3]
    %v451 = vld [vmem:[%s4 + $0x8] sm:$0x3]
    %v452 = vld [vmem:[%s4 + $0xa] sm:$0x3]
    %v453 = vld [vmem:[%s4 + $0xc] sm:$0x3]
    %v454 = vld [vmem:[%s4 + $0xe] sm:$0x3]
    %v455 = vld [vmem:[%s4 + $0x10] sm:$0x3]
    %v456 = vld [vmem:[%s4 + $0x12] sm:$0x3]
    %v457 = vld [vmem:[%s4 + $0x14] sm:$0x3]
    %v458 = vld [vmem:[%s4 + $0x16] sm:$0x3]
    %v459 = vld [vmem:[%s4 + $0x18] sm:$0x3]
    %v460 = vld [vmem:[%s4 + $0x1a] sm:$0x3]
    %v461 = vld [vmem:[%s4 + $0x1c] sm:$0x3]
    %v462 = vld [vmem:[%s4 + $0x1e] sm:$0x3]
    %v463 = vadd.f32 %v155, %v447
    %v464 = vadd.f32 %v156, %v448
    %v465 = vadd.f32 %v157, %v449
    %v466 = vadd.f32 %v158, %v450
    %v467 = vadd.f32 %v159, %v451
    %v468 = vadd.f32 %v160, %v452
    %v469 = vadd.f32 %v161, %v453
    %v470 = vadd.f32 %v162, %v454
    %v471 = vadd.f32 %v163, %v455
    %v472 = vadd.f32 %v164, %v456
    %v473 = vadd.f32 %v165, %v457
    %v474 = vadd.f32 %v166, %v458
    %v475 = vadd.f32 %v167, %v459
    %v476 = vadd.f32 %v168, %v460
    %v477 = vadd.f32 %v169, %v461
    %v478 = vadd.f32 %v170, %v462
    %v479 = vld [vmem:[%s7] sm:$0xff]
    %v480 = vld [vmem:[%s7 + $0x8] sm:$0xff]
    %v481 = vld [vmem:[%s7 + $0x10] sm:$0xff]
    %v482 = vld [vmem:[%s7 + $0x18] sm:$0xff]
    %v483 = vld [vmem:[%s8] sm:$0x1]
    %v485 = vperm.slane %v483, 0
    %495 = vst [vmem:[#allocation1] ss:$4 sm:$0xff] %v439
    %s496 = scalar_lea.vmem [#allocation1], 1
    %497 = vst [vmem:[%s496] ss:$4 sm:$0xff] %v440
    %s498 = scalar_lea.vmem [#allocation1], 2
    %499 = vst [vmem:[%s498] ss:$4 sm:$0xff] %v441
    %s500 = scalar_lea.vmem [#allocation1], 3
    %501 = vst [vmem:[%s500] ss:$4 sm:$0xff] %v442
    %s502 = scalar_lea.vmem [#allocation1], 32
    %503 = vst [vmem:[%s502] ss:$4 sm:$0xff] %v443
    %s504 = scalar_lea.vmem [#allocation1], 33
    %505 = vst [vmem:[%s504] ss:$4 sm:$0xff] %v444
    %s506 = scalar_lea.vmem [#allocation1], 34
    %507 = vst [vmem:[%s506] ss:$4 sm:$0xff] %v445
    %s508 = scalar_lea.vmem [#allocation1], 35
    %509 = vst [vmem:[%s508] ss:$4 sm:$0xff] %v446
    %v510 = vld.sshfl [vmem:[#allocation1] sm:$0xff pattern:$0x73625140]
    %v511 = vld.sshfl [vmem:[#allocation1 + $0x20] sm:$0xff pattern:$0x73625140]
    %v512 = vsel %vm216, %v510, 0
    %v514 = vsel %vm216, %v511, 0
    %516 = vmatpush.msra.mxu0 0.0
    %517 = vmatpush.msra.mxu0 0.0
    %518 = vmatpush.msra.mxu0 0.0
    %519 = vmatpush.msra.mxu0 0.0
    %520 = vmatpush.msra.mxu0 0.0
    %521 = vmatpush.msra.mxu0 0.0
    %522 = vmatpush.msra.mxu0 0.0
    %523 = vmatpush.msra.mxu0 0.0
    %524 = vmatpush.msra.mxu0 0.0
    %525 = vmatpush.msra.mxu0 0.0
    %526 = vmatpush.msra.mxu0 0.0
    %527 = vmatpush.msra.mxu0 0.0
    %528 = vmatpush.msra.mxu0 %v482
    %529 = vmatpush.msra.mxu0 %v481
    %530 = vmatpush.msra.mxu0 %v480
    %531 = vmatpush.msra.mxu0 %v479
    %532 = vmatmul.f32.gmra.mxu0 %v512
    %v533 = vpop.f32.mrf.mxu0
    %v534 = vadd.f32 %v485, %v533
    %535 = vmatmul.f32.gmra.mxu0 %v514
    %v536 = vpop.f32.mrf.mxu0
    %v537 = vadd.f32 %v485, %v536
    %538 = vdwg.mxu0
    %v539 = vld [vmem:[%s9] sm:$0xff]
    %v540 = vld [vmem:[%s9 + $0x8] sm:$0xff]
    %v541 = vld [vmem:[%s9 + $0x10] sm:$0xff]
    %v542 = vld [vmem:[%s9 + $0x18] sm:$0xff]
    %v543 = vld [vmem:[%s10] sm:$0x1]
    %v545 = vperm.slane %v543, 0
    %563 = vst [vmem:[#allocation1] ss:$4 sm:$0xff] %v463
    %s564 = scalar_lea.vmem [#allocation1], 1
    %565 = vst [vmem:[%s564] ss:$4 sm:$0xff] %v464
    %s566 = scalar_lea.vmem [#allocation1], 2
    %567 = vst [vmem:[%s566] ss:$4 sm:$0xff] %v465
    %s568 = scalar_lea.vmem [#allocation1], 3
    %569 = vst [vmem:[%s568] ss:$4 sm:$0xff] %v466
    %s570 = scalar_lea.vmem [#allocation1], 32
    %571 = vst [vmem:[%s570] ss:$4 sm:$0xff] %v467
    %s572 = scalar_lea.vmem [#allocation1], 33
    %573 = vst [vmem:[%s572] ss:$4 sm:$0xff] %v468
    %s574 = scalar_lea.vmem [#allocation1], 34
    %575 = vst [vmem:[%s574] ss:$4 sm:$0xff] %v469
    %s576 = scalar_lea.vmem [#allocation1], 35
    %577 = vst [vmem:[%s576] ss:$4 sm:$0xff] %v470
    %v578 = vld.sshfl [vmem:[#allocation1] sm:$0xff pattern:$0x73625140]
    %v579 = vld.sshfl [vmem:[#allocation1 + $0x20] sm:$0xff pattern:$0x73625140]
    %580 = vst [vmem:[#allocation1] ss:$4 sm:$0xff] %v471
    %581 = vst [vmem:[%s564] ss:$4 sm:$0xff] %v472
    %582 = vst [vmem:[%s566] ss:$4 sm:$0xff] %v473
    %583 = vst [vmem:[%s568] ss:$4 sm:$0xff] %v474
    %584 = vst [vmem:[%s570] ss:$4 sm:$0xff] %v475
    %585 = vst [vmem:[%s572] ss:$4 sm:$0xff] %v476
    %586 = vst [vmem:[%s574] ss:$4 sm:$0xff] %v477
    %587 = vst [vmem:[%s576] ss:$4 sm:$0xff] %v478
    %v588 = vld.sshfl [vmem:[#allocation1] sm:$0xff pattern:$0x73625140]
    %v589 = vld.sshfl [vmem:[#allocation1 + $0x20] sm:$0xff pattern:$0x73625140]
    %v590 = vsel %vm216, %v578, 0
    %v592 = vsel %vm216, %v579, 0
    %v594 = vsel %vm216, %v588, 0
    %v596 = vsel %vm216, %v589, 0
    %598 = vmatpush.msra.mxu0 0.0
    %599 = vmatpush.msra.mxu0 0.0
    %600 = vmatpush.msra.mxu0 0.0
    %601 = vmatpush.msra.mxu0 0.0
    %602 = vmatpush.msra.mxu0 0.0
    %603 = vmatpush.msra.mxu0 0.0
    %604 = vmatpush.msra.mxu0 0.0
    %605 = vmatpush.msra.mxu0 0.0
    %606 = vmatpush.msra.mxu0 0.0
    %607 = vmatpush.msra.mxu0 0.0
    %608 = vmatpush.msra.mxu0 0.0
    %609 = vmatpush.msra.mxu0 0.0
    %610 = vmatpush.msra.mxu0 %v542
    %611 = vmatpush.msra.mxu0 %v541
    %612 = vmatpush.msra.mxu0 %v540
    %613 = vmatpush.msra.mxu0 %v539
    %614 = vmatmul.f32.gmra.mxu0 %v590
    %v615 = vpop.f32.mrf.mxu0
    %v616 = vadd.f32 %v545, %v615
    %617 = vmatmul.f32.gmra.mxu0 %v592
    %v618 = vpop.f32.mrf.mxu0
    %v619 = vadd.f32 %v545, %v618
    %620 = vmatmul.f32.gmra.mxu0 %v594
    %v621 = vpop.f32.mrf.mxu0
    %v622 = vadd.f32 %v545, %v621
    %623 = vmatmul.f32.gmra.mxu0 %v596
    %v624 = vpop.f32.mrf.mxu0
    %v625 = vadd.f32 %v545, %v624
    %626 = vdwg.mxu0
    %v627 = vld [vmem:[#allocation7] sm:$0xff]
    %v628 = vld [vmem:[#allocation7 + $0x8] sm:$0xff]
    %v629 = vld [vmem:[#allocation7 + $0x10] sm:$0xff]
    %v630 = vld [vmem:[#allocation7 + $0x18] sm:$0xff]
    %v631 = vld [vmem:[%s12] sm:$0x1]
    %v633 = vperm.slane %v631, 0
    %651 = vst [vmem:[#allocation1] ss:$4 sm:$0xff] %v171
    %s652 = scalar_lea.vmem [#allocation1], 1
    %653 = vst [vmem:[%s652] ss:$4 sm:$0xff] %v172
    %s654 = scalar_lea.vmem [#allocation1], 2
    %655 = vst [vmem:[%s654] ss:$4 sm:$0xff] %v173
    %s656 = scalar_lea.vmem [#allocation1], 3
    %657 = vst [vmem:[%s656] ss:$4 sm:$0xff] %v174
    %s658 = scalar_lea.vmem [#allocation1], 32
    %659 = vst [vmem:[%s658] ss:$4 sm:$0xff] %v175
    %s660 = scalar_lea.vmem [#allocation1], 33
    %661 = vst [vmem:[%s660] ss:$4 sm:$0xff] %v176
    %s662 = scalar_lea.vmem [#allocation1], 34
    %663 = vst [vmem:[%s662] ss:$4 sm:$0xff] %v177
    %s664 = scalar_lea.vmem [#allocation1], 35
    %665 = vst [vmem:[%s664] ss:$4 sm:$0xff] %v178
    %v666 = vld.sshfl [vmem:[#allocation1] sm:$0xff pattern:$0x73625140]
    %v667 = vld.sshfl [vmem:[#allocation1 + $0x20] sm:$0xff pattern:$0x73625140]
    %668 = vst [vmem:[#allocation1] ss:$4 sm:$0xff] %v179
    %669 = vst [vmem:[%s652] ss:$4 sm:$0xff] %v180
    %670 = vst [vmem:[%s654] ss:$4 sm:$0xff] %v181
    %671 = vst [vmem:[%s656] ss:$4 sm:$0xff] %v182
    %672 = vst [vmem:[%s658] ss:$4 sm:$0xff] %v183
    %673 = vst [vmem:[%s660] ss:$4 sm:$0xff] %v184
    %674 = vst [vmem:[%s662] ss:$4 sm:$0xff] %v185
    %675 = vst [vmem:[%s664] ss:$4 sm:$0xff] %v186
    %v676 = vld.sshfl [vmem:[#allocation1] sm:$0xff pattern:$0x73625140]
    %v677 = vld.sshfl [vmem:[#allocation1 + $0x20] sm:$0xff pattern:$0x73625140]
    %v678 = vsel %vm216, %v666, 0
    %v680 = vsel %vm216, %v667, 0
    %v682 = vsel %vm216, %v676, 0
    %v684 = vsel %vm216, %v677, 0
    %686 = vmatpush.msra.mxu0 0.0
    %687 = vmatpush.msra.mxu0 0.0
    %688 = vmatpush.msra.mxu0 0.0
    %689 = vmatpush.msra.mxu0 0.0
    %690 = vmatpush.msra.mxu0 0.0
    %691 = vmatpush.msra.mxu0 0.0
    %692 = vmatpush.msra.mxu0 0.0
    %693 = vmatpush.msra.mxu0 0.0
    %694 = vmatpush.msra.mxu0 0.0
    %695 = vmatpush.msra.mxu0 0.0
    %696 = vmatpush.msra.mxu0 0.0
    %697 = vmatpush.msra.mxu0 0.0
    %698 = vmatpush.msra.mxu0 %v630
    %699 = vmatpush.msra.mxu0 %v629
    %700 = vmatpush.msra.mxu0 %v628
    %701 = vmatpush.msra.mxu0 %v627
    %702 = vmatmul.f32.gmra.mxu0 %v678
    %v703 = vpop.f32.mrf.mxu0
    %v704 = vadd.f32 %v633, %v703
    %705 = vmatmul.f32.gmra.mxu0 %v680
    %v706 = vpop.f32.mrf.mxu0
    %v707 = vadd.f32 %v633, %v706
    %708 = vmatmul.f32.gmra.mxu0 %v682
    %v709 = vpop.f32.mrf.mxu0
    %v710 = vadd.f32 %v633, %v709
    %711 = vmatmul.f32.gmra.mxu0 %v684
    %v712 = vpop.f32.mrf.mxu0
    %v713 = vadd.f32 %v633, %v712
    %714 = vdwg.mxu0
    %v715 = vmul.f32 %v534, 0.35355338
    %v716 = vmul.f32 %v537, 0.35355338
    %v719 = vrot.slane %v715, 2
    %v720 = vrot.slane %v715, 4
    %v721 = vrot.slane %v715, 6
    %v722 = vrot.slane %v716, 2
    %v723 = vrot.slane %v716, 4
    %v724 = vrot.slane %v716, 6
    %v731 = vrot.slane %v719, 4
    %vm732 = vcmask 1047556
    %v733 = vsel %vm732, %v731, %v715
    %v735 = vunpack.c.l.s4 1934713408
    %v736 = vunpack.c.0.s8 %v735
    %v737 = vperm.slane %v733, %v736
    %v738 = vrot.slane %v737, 4
    %v739 = vsel %vm732, 0.0, %v738
    %v740 = vrot.slane %v721, 4
    %v741 = vsel %vm732, %v740, %v720
    %v743 = vunpack.c.l.s4 1934713408
    %v744 = vunpack.c.0.s8 %v743
    %v745 = vperm.slane %v741, %v744
    %v746 = vrot.slane %v745, 4
    %v747 = vsel %vm732, 0.0, %v746
    %v748 = vrot.slane %v722, 4
    %v749 = vsel %vm732, %v748, %v716
    %v751 = vunpack.c.l.s4 1934713408
    %v752 = vunpack.c.0.s8 %v751
    %v753 = vperm.slane %v749, %v752
    %v754 = vrot.slane %v753, 4
    %v755 = vsel %vm732, 0.0, %v754
    %v756 = vrot.slane %v724, 4
    %v757 = vsel %vm732, %v756, %v723
    %v759 = vunpack.c.l.s4 1934713408
    %v760 = vunpack.c.0.s8 %v759
    %v761 = vperm.slane %v757, %v760
    %v762 = vrot.slane %v761, 4
    %v763 = vsel %vm732, 0.0, %v762
    %v768 = vrot.slane %v616, 2
    %v769 = vrot.slane %v616, 4
    %v770 = vrot.slane %v616, 6
    %v771 = vrot.slane %v619, 2
    %v772 = vrot.slane %v619, 4
    %v773 = vrot.slane %v619, 6
    %v774 = vrot.slane %v622, 2
    %v775 = vrot.slane %v622, 4
    %v776 = vrot.slane %v622, 6
    %v777 = vrot.slane %v625, 2
    %v778 = vrot.slane %v625, 4
    %v779 = vrot.slane %v625, 6
    %v792 = vrot.slane %v768, 4
    %v793 = vsel %vm732, %v792, %v616
    %v795 = vunpack.c.l.s4 1934713408
    %v796 = vunpack.c.0.s8 %v795
    %v797 = vperm.slane %v793, %v796
    %v798 = vrot.slane %v797, 4
    %v799 = vsel %vm732, 0.0, %v798
    %v800 = vrot.slane %v770, 4
    %v801 = vsel %vm732, %v800, %v769
    %v803 = vunpack.c.l.s4 1934713408
    %v804 = vunpack.c.0.s8 %v803
    %v805 = vperm.slane %v801, %v804
    %v806 = vrot.slane %v805, 4
    %v807 = vsel %vm732, 0.0, %v806
    %v808 = vrot.slane %v771, 4
    %v809 = vsel %vm732, %v808, %v619
    %v811 = vunpack.c.l.s4 1934713408
    %v812 = vunpack.c.0.s8 %v811
    %v813 = vperm.slane %v809, %v812
    %v814 = vrot.slane %v813, 4
    %v815 = vsel %vm732, 0.0, %v814
    %v816 = vrot.slane %v773, 4
    %v817 = vsel %vm732, %v816, %v772
    %v819 = vunpack.c.l.s4 1934713408
    %v820 = vunpack.c.0.s8 %v819
    %v821 = vperm.slane %v817, %v820
    %v822 = vrot.slane %v821, 4
    %v823 = vsel %vm732, 0.0, %v822
    %v824 = vrot.slane %v774, 4
    %v825 = vsel %vm732, %v824, %v622
    %v827 = vunpack.c.l.s4 1934713408
    %v828 = vunpack.c.0.s8 %v827
    %v829 = vperm.slane %v825, %v828
    %v830 = vrot.slane %v829, 4
    %v831 = vsel %vm732, 0.0, %v830
    %v832 = vrot.slane %v776, 4
    %v833 = vsel %vm732, %v832, %v775
    %v835 = vunpack.c.l.s4 1934713408
    %v836 = vunpack.c.0.s8 %v835
    %v837 = vperm.slane %v833, %v836
    %v838 = vrot.slane %v837, 4
    %v839 = vsel %vm732, 0.0, %v838
    %v840 = vrot.slane %v777, 4
    %v841 = vsel %vm732, %v840, %v625
    %v843 = vunpack.c.l.s4 1934713408
    %v844 = vunpack.c.0.s8 %v843
    %v845 = vperm.slane %v841, %v844
    %v846 = vrot.slane %v845, 4
    %v847 = vsel %vm732, 0.0, %v846
    %v848 = vrot.slane %v779, 4
    %v849 = vsel %vm732, %v848, %v778
    %v851 = vunpack.c.l.s4 1934713408
    %v852 = vunpack.c.0.s8 %v851
    %v853 = vperm.slane %v849, %v852
    %v854 = vrot.slane %v853, 4
    %v855 = vsel %vm732, 0.0, %v854
    %v860 = vrot.slane %v704, 2
    %v861 = vrot.slane %v704, 4
    %v862 = vrot.slane %v704, 6
    %v863 = vrot.slane %v707, 2
    %v864 = vrot.slane %v707, 4
    %v865 = vrot.slane %v707, 6
    %v866 = vrot.slane %v710, 2
    %v867 = vrot.slane %v710, 4
    %v868 = vrot.slane %v710, 6
    %v869 = vrot.slane %v713, 2
    %v870 = vrot.slane %v713, 4
    %v871 = vrot.slane %v713, 6
    %v884 = vrot.slane %v860, 4
    %v885 = vsel %vm732, %v884, %v704
    %v887 = vunpack.c.l.s4 1934713408
    %v888 = vunpack.c.0.s8 %v887
    %v889 = vperm.slane %v885, %v888
    %v890 = vrot.slane %v889, 4
    %v891 = vsel %vm732, 0.0, %v890
    %v892 = vrot.slane %v862, 4
    %v893 = vsel %vm732, %v892, %v861
    %v895 = vunpack.c.l.s4 1934713408
    %v896 = vunpack.c.0.s8 %v895
    %v897 = vperm.slane %v893, %v896
    %v898 = vrot.slane %v897, 4
    %v899 = vsel %vm732, 0.0, %v898
    %v900 = vrot.slane %v863, 4
    %v901 = vsel %vm732, %v900, %v707
    %v903 = vunpack.c.l.s4 1934713408
    %v904 = vunpack.c.0.s8 %v903
    %v905 = vperm.slane %v901, %v904
    %v906 = vrot.slane %v905, 4
    %v907 = vsel %vm732, 0.0, %v906
    %v908 = vrot.slane %v865, 4
    %v909 = vsel %vm732, %v908, %v864
    %v911 = vunpack.c.l.s4 1934713408
    %v912 = vunpack.c.0.s8 %v911
    %v913 = vperm.slane %v909, %v912
    %v914 = vrot.slane %v913, 4
    %v915 = vsel %vm732, 0.0, %v914
    %v916 = vrot.slane %v866, 4
    %v917 = vsel %vm732, %v916, %v710
    %v919 = vunpack.c.l.s4 1934713408
    %v920 = vunpack.c.0.s8 %v919
    %v921 = vperm.slane %v917, %v920
    %v922 = vrot.slane %v921, 4
    %v923 = vsel %vm732, 0.0, %v922
    %v924 = vrot.slane %v868, 4
    %v925 = vsel %vm732, %v924, %v867
    %v927 = vunpack.c.l.s4 1934713408
    %v928 = vunpack.c.0.s8 %v927
    %v929 = vperm.slane %v925, %v928
    %v930 = vrot.slane %v929, 4
    %v931 = vsel %vm732, 0.0, %v930
    %v932 = vrot.slane %v869, 4
    %v933 = vsel %vm732, %v932, %v713
    %v935 = vunpack.c.l.s4 1934713408
    %v936 = vunpack.c.0.s8 %v935
    %v937 = vperm.slane %v933, %v936
    %v938 = vrot.slane %v937, 4
    %v939 = vsel %vm732, 0.0, %v938
    %v940 = vrot.slane %v871, 4
    %v941 = vsel %vm732, %v940, %v870
    %v943 = vunpack.c.l.s4 1934713408
    %v944 = vunpack.c.0.s8 %v943
    %v945 = vperm.slane %v941, %v944
    %v946 = vrot.slane %v945, 4
    %v947 = vsel %vm732, 0.0, %v946
    %956 = vrot.lane.b32.xlu0 %v737, 120
    %v957 = vpop.permute.xlu0 %956
    %958 = vrot.lane.b32.xlu0 %v745, 120
    %v959 = vpop.permute.xlu0 %958
    %960 = vrot.lane.b32.xlu0 %v753, 120
    %v961 = vpop.permute.xlu0 %960
    %962 = vrot.lane.b32.xlu0 %v761, 120
    %v963 = vpop.permute.xlu0 %962
    %964 = vrot.lane.b32.xlu0 %v739, 120
    %v965 = vpop.permute.xlu0 %964
    %966 = vrot.lane.b32.xlu0 %v747, 120
    %v967 = vpop.permute.xlu0 %966
    %968 = vrot.lane.b32.xlu0 %v755, 120
    %v969 = vpop.permute.xlu0 %968
    %970 = vrot.lane.b32.xlu0 %v763, 120
    %v971 = vpop.permute.xlu0 %970
    %972 = vrot.lane.b32.xlu0 %v737, 112
    %v973 = vpop.permute.xlu0 %972
    %974 = vrot.lane.b32.xlu0 %v745, 112
    %v975 = vpop.permute.xlu0 %974
    %976 = vrot.lane.b32.xlu0 %v753, 112
    %v977 = vpop.permute.xlu0 %976
    %978 = vrot.lane.b32.xlu0 %v761, 112
    %v979 = vpop.permute.xlu0 %978
    %980 = vrot.lane.b32.xlu0 %v739, 112
    %v981 = vpop.permute.xlu0 %980
    %982 = vrot.lane.b32.xlu0 %v747, 112
    %v983 = vpop.permute.xlu0 %982
    %984 = vrot.lane.b32.xlu0 %v755, 112
    %v985 = vpop.permute.xlu0 %984
    %986 = vrot.lane.b32.xlu0 %v763, 112
    %v987 = vpop.permute.xlu0 %986
    %988 = vrot.lane.b32.xlu0 %v737, 104
    %v989 = vpop.permute.xlu0 %988
    %990 = vrot.lane.b32.xlu0 %v745, 104
    %v991 = vpop.permute.xlu0 %990
    %992 = vrot.lane.b32.xlu0 %v753, 104
    %v993 = vpop.permute.xlu0 %992
    %994 = vrot.lane.b32.xlu0 %v761, 104
    %v995 = vpop.permute.xlu0 %994
    %996 = vrot.lane.b32.xlu0 %v739, 104
    %v997 = vpop.permute.xlu0 %996
    %998 = vrot.lane.b32.xlu0 %v747, 104
    %v999 = vpop.permute.xlu0 %998
    %1000 = vrot.lane.b32.xlu0 %v755, 104
    %v1001 = vpop.permute.xlu0 %1000
    %1002 = vrot.lane.b32.xlu0 %v763, 104
    %v1003 = vpop.permute.xlu0 %1002
    %1020 = vrot.lane.b32.xlu0 %v797, 120
    %v1021 = vpop.permute.xlu0 %1020
    %1022 = vrot.lane.b32.xlu0 %v805, 120
    %v1023 = vpop.permute.xlu0 %1022
    %1024 = vrot.lane.b32.xlu0 %v813, 120
    %v1025 = vpop.permute.xlu0 %1024
    %1026 = vrot.lane.b32.xlu0 %v821, 120
    %v1027 = vpop.permute.xlu0 %1026
    %1028 = vrot.lane.b32.xlu0 %v829, 120
    %v1029 = vpop.permute.xlu0 %1028
    %1030 = vrot.lane.b32.xlu0 %v837, 120
    %v1031 = vpop.permute.xlu0 %1030
    %1032 = vrot.lane.b32.xlu0 %v845, 120
    %v1033 = vpop.permute.xlu0 %1032
    %1034 = vrot.lane.b32.xlu0 %v853, 120
    %v1035 = vpop.permute.xlu0 %1034
    %1036 = vrot.lane.b32.xlu0 %v799, 120
    %v1037 = vpop.permute.xlu0 %1036
    %1038 = vrot.lane.b32.xlu0 %v807, 120
    %v1039 = vpop.permute.xlu0 %1038
    %1040 = vrot.lane.b32.xlu0 %v815, 120
    %v1041 = vpop.permute.xlu0 %1040
    %1042 = vrot.lane.b32.xlu0 %v823, 120
    %v1043 = vpop.permute.xlu0 %1042
    %1044 = vrot.lane.b32.xlu0 %v831, 120
    %v1045 = vpop.permute.xlu0 %1044
    %1046 = vrot.lane.b32.xlu0 %v839, 120
    %v1047 = vpop.permute.xlu0 %1046
    %1048 = vrot.lane.b32.xlu0 %v847, 120
    %v1049 = vpop.permute.xlu0 %1048
    %1050 = vrot.lane.b32.xlu0 %v855, 120
    %v1051 = vpop.permute.xlu0 %1050
    %1052 = vrot.lane.b32.xlu0 %v797, 112
    %v1053 = vpop.permute.xlu0 %1052
    %1054 = vrot.lane.b32.xlu0 %v805, 112
    %v1055 = vpop.permute.xlu0 %1054
    %1056 = vrot.lane.b32.xlu0 %v813, 112
    %v1057 = vpop.permute.xlu0 %1056
    %1058 = vrot.lane.b32.xlu0 %v821, 112
    %v1059 = vpop.permute.xlu0 %1058
    %1060 = vrot.lane.b32.xlu0 %v829, 112
    %v1061 = vpop.permute.xlu0 %1060
    %1062 = vrot.lane.b32.xlu0 %v837, 112
    %v1063 = vpop.permute.xlu0 %1062
    %1064 = vrot.lane.b32.xlu0 %v845, 112
    %v1065 = vpop.permute.xlu0 %1064
    %1066 = vrot.lane.b32.xlu0 %v853, 112
    %v1067 = vpop.permute.xlu0 %1066
    %1068 = vrot.lane.b32.xlu0 %v799, 112
    %v1069 = vpop.permute.xlu0 %1068
    %1070 = vrot.lane.b32.xlu0 %v807, 112
    %v1071 = vpop.permute.xlu0 %1070
    %1072 = vrot.lane.b32.xlu0 %v815, 112
    %v1073 = vpop.permute.xlu0 %1072
    %1074 = vrot.lane.b32.xlu0 %v823, 112
    %v1075 = vpop.permute.xlu0 %1074
    %1076 = vrot.lane.b32.xlu0 %v831, 112
    %v1077 = vpop.permute.xlu0 %1076
    %1078 = vrot.lane.b32.xlu0 %v839, 112
    %v1079 = vpop.permute.xlu0 %1078
    %1080 = vrot.lane.b32.xlu0 %v847, 112
    %v1081 = vpop.permute.xlu0 %1080
    %1082 = vrot.lane.b32.xlu0 %v855, 112
    %v1083 = vpop.permute.xlu0 %1082
    %1084 = vrot.lane.b32.xlu0 %v797, 104
    %v1085 = vpop.permute.xlu0 %1084
    %1086 = vrot.lane.b32.xlu0 %v805, 104
    %v1087 = vpop.permute.xlu0 %1086
    %1088 = vrot.lane.b32.xlu0 %v813, 104
    %v1089 = vpop.permute.xlu0 %1088
    %1090 = vrot.lane.b32.xlu0 %v821, 104
    %v1091 = vpop.permute.xlu0 %1090
    %1092 = vrot.lane.b32.xlu0 %v829, 104
    %v1093 = vpop.permute.xlu0 %1092
    %1094 = vrot.lane.b32.xlu0 %v837, 104
    %v1095 = vpop.permute.xlu0 %1094
    %1096 = vrot.lane.b32.xlu0 %v845, 104
    %v1097 = vpop.permute.xlu0 %1096
    %1098 = vrot.lane.b32.xlu0 %v853, 104
    %v1099 = vpop.permute.xlu0 %1098
    %1100 = vrot.lane.b32.xlu0 %v799, 104
    %v1101 = vpop.permute.xlu0 %1100
    %1102 = vrot.lane.b32.xlu0 %v807, 104
    %v1103 = vpop.permute.xlu0 %1102
    %1104 = vrot.lane.b32.xlu0 %v815, 104
    %v1105 = vpop.permute.xlu0 %1104
    %1106 = vrot.lane.b32.xlu0 %v823, 104
    %v1107 = vpop.permute.xlu0 %1106
    %1108 = vrot.lane.b32.xlu0 %v831, 104
    %v1109 = vpop.permute.xlu0 %1108
    %1110 = vrot.lane.b32.xlu0 %v839, 104
    %v1111 = vpop.permute.xlu0 %1110
    %1112 = vrot.lane.b32.xlu0 %v847, 104
    %v1113 = vpop.permute.xlu0 %1112
    %1114 = vrot.lane.b32.xlu0 %v855, 104
    %v1115 = vpop.permute.xlu0 %1114
    %1132 = vrot.lane.b32.xlu0 %v889, 120
    %v1133 = vpop.permute.xlu0 %1132
    %1134 = vrot.lane.b32.xlu0 %v897, 120
    %v1135 = vpop.permute.xlu0 %1134
    %1136 = vrot.lane.b32.xlu0 %v905, 120
    %v1137 = vpop.permute.xlu0 %1136
    %1138 = vrot.lane.b32.xlu0 %v913, 120
    %v1139 = vpop.permute.xlu0 %1138
    %1140 = vrot.lane.b32.xlu0 %v921, 120
    %v1141 = vpop.permute.xlu0 %1140
    %1142 = vrot.lane.b32.xlu0 %v929, 120
    %v1143 = vpop.permute.xlu0 %1142
    %1144 = vrot.lane.b32.xlu0 %v937, 120
    %v1145 = vpop.permute.xlu0 %1144
    %1146 = vrot.lane.b32.xlu0 %v945, 120
    %v1147 = vpop.permute.xlu0 %1146
    %1148 = vrot.lane.b32.xlu0 %v891, 120
    %v1149 = vpop.permute.xlu0 %1148
    %1150 = vrot.lane.b32.xlu0 %v899, 120
    %v1151 = vpop.permute.xlu0 %1150
    %1152 = vrot.lane.b32.xlu0 %v907, 120
    %v1153 = vpop.permute.xlu0 %1152
    %1154 = vrot.lane.b32.xlu0 %v915, 120
    %v1155 = vpop.permute.xlu0 %1154
    %1156 = vrot.lane.b32.xlu0 %v923, 120
    %v1157 = vpop.permute.xlu0 %1156
    %1158 = vrot.lane.b32.xlu0 %v931, 120
    %v1159 = vpop.permute.xlu0 %1158
    %1160 = vrot.lane.b32.xlu0 %v939, 120
    %v1161 = vpop.permute.xlu0 %1160
    %1162 = vrot.lane.b32.xlu0 %v947, 120
    %v1163 = vpop.permute.xlu0 %1162
    %1164 = vrot.lane.b32.xlu0 %v889, 112
    %v1165 = vpop.permute.xlu0 %1164
    %1166 = vrot.lane.b32.xlu0 %v897, 112
    %v1167 = vpop.permute.xlu0 %1166
    %1168 = vrot.lane.b32.xlu0 %v905, 112
    %v1169 = vpop.permute.xlu0 %1168
    %1170 = vrot.lane.b32.xlu0 %v913, 112
    %v1171 = vpop.permute.xlu0 %1170
    %1172 = vrot.lane.b32.xlu0 %v921, 112
    %v1173 = vpop.permute.xlu0 %1172
    %1174 = vrot.lane.b32.xlu0 %v929, 112
    %v1175 = vpop.permute.xlu0 %1174
    %1176 = vrot.lane.b32.xlu0 %v937, 112
    %v1177 = vpop.permute.xlu0 %1176
    %1178 = vrot.lane.b32.xlu0 %v945, 112
    %v1179 = vpop.permute.xlu0 %1178
    %1180 = vrot.lane.b32.xlu0 %v891, 112
    %v1181 = vpop.permute.xlu0 %1180
    %1182 = vrot.lane.b32.xlu0 %v899, 112
    %v1183 = vpop.permute.xlu0 %1182
    %1184 = vrot.lane.b32.xlu0 %v907, 112
    %v1185 = vpop.permute.xlu0 %1184
    %1186 = vrot.lane.b32.xlu0 %v915, 112
    %v1187 = vpop.permute.xlu0 %1186
    %1188 = vrot.lane.b32.xlu0 %v923, 112
    %v1189 = vpop.permute.xlu0 %1188
    %1190 = vrot.lane.b32.xlu0 %v931, 112
    %v1191 = vpop.permute.xlu0 %1190
    %1192 = vrot.lane.b32.xlu0 %v939, 112
    %v1193 = vpop.permute.xlu0 %1192
    %1194 = vrot.lane.b32.xlu0 %v947, 112
    %v1195 = vpop.permute.xlu0 %1194
    %1196 = vrot.lane.b32.xlu0 %v889, 104
    %v1197 = vpop.permute.xlu0 %1196
    %1198 = vrot.lane.b32.xlu0 %v897, 104
    %v1199 = vpop.permute.xlu0 %1198
    %1200 = vrot.lane.b32.xlu0 %v905, 104
    %v1201 = vpop.permute.xlu0 %1200
    %1202 = vrot.lane.b32.xlu0 %v913, 104
    %v1203 = vpop.permute.xlu0 %1202
    %1204 = vrot.lane.b32.xlu0 %v921, 104
    %v1205 = vpop.permute.xlu0 %1204
    %1206 = vrot.lane.b32.xlu0 %v929, 104
    %v1207 = vpop.permute.xlu0 %1206
    %1208 = vrot.lane.b32.xlu0 %v937, 104
    %v1209 = vpop.permute.xlu0 %1208
    %1210 = vrot.lane.b32.xlu0 %v945, 104
    %v1211 = vpop.permute.xlu0 %1210
    %1212 = vrot.lane.b32.xlu0 %v891, 104
    %v1213 = vpop.permute.xlu0 %1212
    %1214 = vrot.lane.b32.xlu0 %v899, 104
    %v1215 = vpop.permute.xlu0 %1214
    %1216 = vrot.lane.b32.xlu0 %v907, 104
    %v1217 = vpop.permute.xlu0 %1216
    %1218 = vrot.lane.b32.xlu0 %v915, 104
    %v1219 = vpop.permute.xlu0 %1218
    %1220 = vrot.lane.b32.xlu0 %v923, 104
    %v1221 = vpop.permute.xlu0 %1220
    %1222 = vrot.lane.b32.xlu0 %v931, 104
    %v1223 = vpop.permute.xlu0 %1222
    %1224 = vrot.lane.b32.xlu0 %v939, 104
    %v1225 = vpop.permute.xlu0 %1224
    %1226 = vrot.lane.b32.xlu0 %v947, 104
    %v1227 = vpop.permute.xlu0 %1226
    %1228 = vst [vmem:[#allocation1] ss:$4 sm:$0xff] %v737
    %s1229 = scalar_lea.vmem [#allocation1], 1
    %1230 = vst [vmem:[%s1229] ss:$4 sm:$0xff] %v745
    %s1231 = scalar_lea.vmem [#allocation1], 2
    %1232 = vst [vmem:[%s1231] ss:$4 sm:$0xff] %v753
    %s1233 = scalar_lea.vmem [#allocation1], 3
    %1234 = vst [vmem:[%s1233] ss:$4 sm:$0xff] %v761
    %v1235 = vld.sshfl [vmem:[#allocation1] sm:$0xff pattern:$0x73625140]
    %1236 = vst [vmem:[#allocation1] ss:$4 sm:$0xff] %v797
    %s1237 = scalar_lea.vmem [#allocation1], 1
    %1238 = vst [vmem:[%s1237] ss:$4 sm:$0xff] %v805
    %s1239 = scalar_lea.vmem [#allocation1], 2
    %1240 = vst [vmem:[%s1239] ss:$4 sm:$0xff] %v813
    %s1241 = scalar_lea.vmem [#allocation1], 3
    %1242 = vst [vmem:[%s1241] ss:$4 sm:$0xff] %v821
    %s1243 = scalar_lea.vmem [#allocation1], 32
    %1244 = vst [vmem:[%s1243] ss:$4 sm:$0xff] %v829
    %s1245 = scalar_lea.vmem [#allocation1], 33
    %1246 = vst [vmem:[%s1245] ss:$4 sm:$0xff] %v837
    %s1247 = scalar_lea.vmem [#allocation1], 34
    %1248 = vst [vmem:[%s1247] ss:$4 sm:$0xff] %v845
    %s1249 = scalar_lea.vmem [#allocation1], 35
    %1250 = vst [vmem:[%s1249] ss:$4 sm:$0xff] %v853
    %v1251 = vld.sshfl [vmem:[#allocation1] sm:$0xff pattern:$0x73625140]
    %v1252 = vld.sshfl [vmem:[#allocation1 + $0x20] sm:$0xff pattern:$0x73625140]
    %vm1253 = vcmask 64512
    %v1254 = vsel %vm1253, %v1235, 0
    %v1256 = vsel %vm1253, %v1251, 0
    %v1258 = vsel %vm1253, %v1252, 0
    %1260 = vmatpush.xpose.msra.mxu0 0.0
    %1261 = vmatpush.xpose.msra.mxu0 0.0
    %1262 = vmatpush.xpose.msra.mxu0 0.0
    %1263 = vmatpush.xpose.msra.mxu0 0.0
    %1264 = vmatpush.xpose.msra.mxu0 0.0
    %1265 = vmatpush.xpose.msra.mxu0 0.0
    %1266 = vmatpush.xpose.msra.mxu0 0.0
    %1267 = vmatpush.xpose.msra.mxu0 0.0
    %1268 = vmatpush.xpose.msra.mxu0 0.0
    %1269 = vmatpush.xpose.msra.mxu0 0.0
    %1270 = vmatpush.xpose.msra.mxu0 0.0
    %1271 = vmatpush.xpose.msra.mxu0 0.0
    %1272 = vmatpush.xpose.msra.mxu0 0.0
    %1273 = vmatpush.xpose.msra.mxu0 0.0
    %1274 = vmatpush.xpose.msra.mxu0 %v1258
    %1275 = vmatpush.xpose.msra.mxu0 %v1256
    %1276 = vmatmul.f32.gmra.mxu0 %v1254
    %v1277 = vpop.f32.mrf.mxu0
    %v1278 = vadd.f32 0.0, %v1277
    %1279 = vdwg.mxu0
    %1280 = vst [vmem:[#allocation1] ss:$4 sm:$0xff] %v739
    %s1281 = scalar_lea.vmem [#allocation1], 1
    %1282 = vst [vmem:[%s1281] ss:$4 sm:$0xff] %v747
    %s1283 = scalar_lea.vmem [#allocation1], 2
    %1284 = vst [vmem:[%s1283] ss:$4 sm:$0xff] %v755
    %s1285 = scalar_lea.vmem [#allocation1], 3
    %1286 = vst [vmem:[%s1285] ss:$4 sm:$0xff] %v763
    %v1287 = vld.sshfl [vmem:[#allocation1] sm:$0xff pattern:$0x73625140]
    %1288 = vst [vmem:[#allocation1] ss:$4 sm:$0xff] %v799
    %s1289 = scalar_lea.vmem [#allocation1], 1
    %1290 = vst [vmem:[%s1289] ss:$4 sm:$0xff] %v807
    %s1291 = scalar_lea.vmem [#allocation1], 2
    %1292 = vst [vmem:[%s1291] ss:$4 sm:$0xff] %v815
    %s1293 = scalar_lea.vmem [#allocation1], 3
    %1294 = vst [vmem:[%s1293] ss:$4 sm:$0xff] %v823
    %s1295 = scalar_lea.vmem [#allocation1], 32
    %1296 = vst [vmem:[%s1295] ss:$4 sm:$0xff] %v831
    %s1297 = scalar_lea.vmem [#allocation1], 33
    %1298 = vst [vmem:[%s1297] ss:$4 sm:$0xff] %v839
    %s1299 = scalar_lea.vmem [#allocation1], 34
    %1300 = vst [vmem:[%s1299] ss:$4 sm:$0xff] %v847
    %s1301 = scalar_lea.vmem [#allocation1], 35
    %1302 = vst [vmem:[%s1301] ss:$4 sm:$0xff] %v855
    %v1303 = vld.sshfl [vmem:[#allocation1] sm:$0xff pattern:$0x73625140]
    %v1304 = vld.sshfl [vmem:[#allocation1 + $0x20] sm:$0xff pattern:$0x73625140]
    %v1305 = vsel %vm1253, %v1287, 0
    %v1307 = vsel %vm1253, %v1303, 0
    %v1309 = vsel %vm1253, %v1304, 0
    %1311 = vmatpush.xpose.msra.mxu0 0.0
    %1312 = vmatpush.xpose.msra.mxu0 0.0
    %1313 = vmatpush.xpose.msra.mxu0 0.0
    %1314 = vmatpush.xpose.msra.mxu0 0.0
    %1315 = vmatpush.xpose.msra.mxu0 0.0
    %1316 = vmatpush.xpose.msra.mxu0 0.0
    %1317 = vmatpush.xpose.msra.mxu0 0.0
    %1318 = vmatpush.xpose.msra.mxu0 0.0
    %1319 = vmatpush.xpose.msra.mxu0 0.0
    %1320 = vmatpush.xpose.msra.mxu0 0.0
    %1321 = vmatpush.xpose.msra.mxu0 0.0
    %1322 = vmatpush.xpose.msra.mxu0 0.0
    %1323 = vmatpush.xpose.msra.mxu0 0.0
    %1324 = vmatpush.xpose.msra.mxu0 0.0
    %1325 = vmatpush.xpose.msra.mxu0 %v1309
    %1326 = vmatpush.xpose.msra.mxu0 %v1307
    %1327 = vmatmul.f32.gmra.mxu0 %v1305
    %v1328 = vpop.f32.mrf.mxu0
    %v1329 = vadd.f32 0.0, %v1328
    %1330 = vdwg.mxu0
    %1331 = vst [vmem:[#allocation1] ss:$4 sm:$0xff] %v957
    %s1332 = scalar_lea.vmem [#allocation1], 1
    %1333 = vst [vmem:[%s1332] ss:$4 sm:$0xff] %v959
    %s1334 = scalar_lea.vmem [#allocation1], 2
    %1335 = vst [vmem:[%s1334] ss:$4 sm:$0xff] %v961
    %s1336 = scalar_lea.vmem [#allocation1], 3
    %1337 = vst [vmem:[%s1336] ss:$4 sm:$0xff] %v963
    %v1338 = vld.sshfl [vmem:[#allocation1] sm:$0xff pattern:$0x73625140]
    %1339 = vst [vmem:[#allocation1] ss:$4 sm:$0xff] %v1021
    %s1340 = scalar_lea.vmem [#allocation1], 1
    %1341 = vst [vmem:[%s1340] ss:$4 sm:$0xff] %v1023
    %s1342 = scalar_lea.vmem [#allocation1], 2
    %1343 = vst [vmem:[%s1342] ss:$4 sm:$0xff] %v1025
    %s1344 = scalar_lea.vmem [#allocation1], 3
    %1345 = vst [vmem:[%s1344] ss:$4 sm:$0xff] %v1027
    %s1346 = scalar_lea.vmem [#allocation1], 32
    %1347 = vst [vmem:[%s1346] ss:$4 sm:$0xff] %v1029
    %s1348 = scalar_lea.vmem [#allocation1], 33
    %1349 = vst [vmem:[%s1348] ss:$4 sm:$0xff] %v1031
    %s1350 = scalar_lea.vmem [#allocation1], 34
    %1351 = vst [vmem:[%s1350] ss:$4 sm:$0xff] %v1033
    %s1352 = scalar_lea.vmem [#allocation1], 35
    %1353 = vst [vmem:[%s1352] ss:$4 sm:$0xff] %v1035
    %v1354 = vld.sshfl [vmem:[#allocation1] sm:$0xff pattern:$0x73625140]
    %v1355 = vld.sshfl [vmem:[#allocation1 + $0x20] sm:$0xff pattern:$0x73625140]
    %v1356 = vsel %vm1253, %v1338, 0
    %v1358 = vsel %vm1253, %v1354, 0
    %v1360 = vsel %vm1253, %v1355, 0
    %1362 = vmatpush.xpose.msra.mxu0 0.0
    %1363 = vmatpush.xpose.msra.mxu0 0.0
    %1364 = vmatpush.xpose.msra.mxu0 0.0
    %1365 = vmatpush.xpose.msra.mxu0 0.0
    %1366 = vmatpush.xpose.msra.mxu0 0.0
    %1367 = vmatpush.xpose.msra.mxu0 0.0
    %1368 = vmatpush.xpose.msra.mxu0 0.0
    %1369 = vmatpush.xpose.msra.mxu0 0.0
    %1370 = vmatpush.xpose.msra.mxu0 0.0
    %1371 = vmatpush.xpose.msra.mxu0 0.0
    %1372 = vmatpush.xpose.msra.mxu0 0.0
    %1373 = vmatpush.xpose.msra.mxu0 0.0
    %1374 = vmatpush.xpose.msra.mxu0 0.0
    %1375 = vmatpush.xpose.msra.mxu0 0.0
    %1376 = vmatpush.xpose.msra.mxu0 %v1360
    %1377 = vmatpush.xpose.msra.mxu0 %v1358
    %1378 = vmatmul.f32.gmra.mxu0 %v1356
    %v1379 = vpop.f32.mrf.mxu0
    %v1380 = vadd.f32 0.0, %v1379
    %1381 = vdwg.mxu0
    %1382 = vst [vmem:[#allocation1] ss:$4 sm:$0xff] %v965
    %s1383 = scalar_lea.vmem [#allocation1], 1
    %1384 = vst [vmem:[%s1383] ss:$4 sm:$0xff] %v967
    %s1385 = scalar_lea.vmem [#allocation1], 2
    %1386 = vst [vmem:[%s1385] ss:$4 sm:$0xff] %v969
    %s1387 = scalar_lea.vmem [#allocation1], 3
    %1388 = vst [vmem:[%s1387] ss:$4 sm:$0xff] %v971
    %v1389 = vld.sshfl [vmem:[#allocation1] sm:$0xff pattern:$0x73625140]
    %1390 = vst [vmem:[#allocation1] ss:$4 sm:$0xff] %v1037
    %s1391 = scalar_lea.vmem [#allocation1], 1
    %1392 = vst [vmem:[%s1391] ss:$4 sm:$0xff] %v1039
    %s1393 = scalar_lea.vmem [#allocation1], 2
    %1394 = vst [vmem:[%s1393] ss:$4 sm:$0xff] %v1041
    %s1395 = scalar_lea.vmem [#allocation1], 3
    %1396 = vst [vmem:[%s1395] ss:$4 sm:$0xff] %v1043
    %s1397 = scalar_lea.vmem [#allocation1], 32
    %1398 = vst [vmem:[%s1397] ss:$4 sm:$0xff] %v1045
    %s1399 = scalar_lea.vmem [#allocation1], 33
    %1400 = vst [vmem:[%s1399] ss:$4 sm:$0xff] %v1047
    %s1401 = scalar_lea.vmem [#allocation1], 34
    %1402 = vst [vmem:[%s1401] ss:$4 sm:$0xff] %v1049
    %s1403 = scalar_lea.vmem [#allocation1], 35
    %1404 = vst [vmem:[%s1403] ss:$4 sm:$0xff] %v1051
    %v1405 = vld.sshfl [vmem:[#allocation1] sm:$0xff pattern:$0x73625140]
    %v1406 = vld.sshfl [vmem:[#allocation1 + $0x20] sm:$0xff pattern:$0x73625140]
    %v1407 = vsel %vm1253, %v1389, 0
    %v1409 = vsel %vm1253, %v1405, 0
    %v1411 = vsel %vm1253, %v1406, 0
    %1413 = vmatpush.xpose.msra.mxu0 0.0
    %1414 = vmatpush.xpose.msra.mxu0 0.0
    %1415 = vmatpush.xpose.msra.mxu0 0.0
    %1416 = vmatpush.xpose.msra.mxu0 0.0
    %1417 = vmatpush.xpose.msra.mxu0 0.0
    %1418 = vmatpush.xpose.msra.mxu0 0.0
    %1419 = vmatpush.xpose.msra.mxu0 0.0
    %1420 = vmatpush.xpose.msra.mxu0 0.0
    %1421 = vmatpush.xpose.msra.mxu0 0.0
    %1422 = vmatpush.xpose.msra.mxu0 0.0
    %1423 = vmatpush.xpose.msra.mxu0 0.0
    %1424 = vmatpush.xpose.msra.mxu0 0.0
    %1425 = vmatpush.xpose.msra.mxu0 0.0
    %1426 = vmatpush.xpose.msra.mxu0 0.0
    %1427 = vmatpush.xpose.msra.mxu0 %v1411
    %1428 = vmatpush.xpose.msra.mxu0 %v1409
    %1429 = vmatmul.f32.gmra.mxu0 %v1407
    %v1430 = vpop.f32.mrf.mxu0
    %v1431 = vadd.f32 0.0, %v1430
    %1432 = vdwg.mxu0
    %1433 = vst [vmem:[#allocation1] ss:$4 sm:$0xff] %v973
    %s1434 = scalar_lea.vmem [#allocation1], 1
    %1435 = vst [vmem:[%s1434] ss:$4 sm:$0xff] %v975
    %s1436 = scalar_lea.vmem [#allocation1], 2
    %1437 = vst [vmem:[%s1436] ss:$4 sm:$0xff] %v977
    %s1438 = scalar_lea.vmem [#allocation1], 3
    %1439 = vst [vmem:[%s1438] ss:$4 sm:$0xff] %v979
    %v1440 = vld.sshfl [vmem:[#allocation1] sm:$0xff pattern:$0x73625140]
    %1441 = vst [vmem:[#allocation1] ss:$4 sm:$0xff] %v1053
    %s1442 = scalar_lea.vmem [#allocation1], 1
    %1443 = vst [vmem:[%s1442] ss:$4 sm:$0xff] %v1055
    %s1444 = scalar_lea.vmem [#allocation1], 2
    %1445 = vst [vmem:[%s1444] ss:$4 sm:$0xff] %v1057
    %s1446 = scalar_lea.vmem [#allocation1], 3
    %1447 = vst [vmem:[%s1446] ss:$4 sm:$0xff] %v1059
    %s1448 = scalar_lea.vmem [#allocation1], 32
    %1449 = vst [vmem:[%s1448] ss:$4 sm:$0xff] %v1061
    %s1450 = scalar_lea.vmem [#allocation1], 33
    %1451 = vst [vmem:[%s1450] ss:$4 sm:$0xff] %v1063
    %s1452 = scalar_lea.vmem [#allocation1], 34
    %1453 = vst [vmem:[%s1452] ss:$4 sm:$0xff] %v1065
    %s1454 = scalar_lea.vmem [#allocation1], 35
    %1455 = vst [vmem:[%s1454] ss:$4 sm:$0xff] %v1067
    %v1456 = vld.sshfl [vmem:[#allocation1] sm:$0xff pattern:$0x73625140]
    %v1457 = vld.sshfl [vmem:[#allocation1 + $0x20] sm:$0xff pattern:$0x73625140]
    %v1458 = vsel %vm1253, %v1440, 0
    %v1460 = vsel %vm1253, %v1456, 0
    %v1462 = vsel %vm1253, %v1457, 0
    %1464 = vmatpush.xpose.msra.mxu0 0.0
    %1465 = vmatpush.xpose.msra.mxu0 0.0
    %1466 = vmatpush.xpose.msra.mxu0 0.0
    %1467 = vmatpush.xpose.msra.mxu0 0.0
    %1468 = vmatpush.xpose.msra.mxu0 0.0
    %1469 = vmatpush.xpose.msra.mxu0 0.0
    %1470 = vmatpush.xpose.msra.mxu0 0.0
    %1471 = vmatpush.xpose.msra.mxu0 0.0
    %1472 = vmatpush.xpose.msra.mxu0 0.0
    %1473 = vmatpush.xpose.msra.mxu0 0.0
    %1474 = vmatpush.xpose.msra.mxu0 0.0
    %1475 = vmatpush.xpose.msra.mxu0 0.0
    %1476 = vmatpush.xpose.msra.mxu0 0.0
    %1477 = vmatpush.xpose.msra.mxu0 0.0
    %1478 = vmatpush.xpose.msra.mxu0 %v1462
    %1479 = vmatpush.xpose.msra.mxu0 %v1460
    %1480 = vmatmul.f32.gmra.mxu0 %v1458
    %v1481 = vpop.f32.mrf.mxu0
    %v1482 = vadd.f32 0.0, %v1481
    %1483 = vdwg.mxu0
    %1484 = vst [vmem:[#allocation1] ss:$4 sm:$0xff] %v981
    %s1485 = scalar_lea.vmem [#allocation1], 1
    %1486 = vst [vmem:[%s1485] ss:$4 sm:$0xff] %v983
    %s1487 = scalar_lea.vmem [#allocation1], 2
    %1488 = vst [vmem:[%s1487] ss:$4 sm:$0xff] %v985
    %s1489 = scalar_lea.vmem [#allocation1], 3
    %1490 = vst [vmem:[%s1489] ss:$4 sm:$0xff] %v987
    %v1491 = vld.sshfl [vmem:[#allocation1] sm:$0xff pattern:$0x73625140]
    %1492 = vst [vmem:[#allocation1] ss:$4 sm:$0xff] %v1069
    %s1493 = scalar_lea.vmem [#allocation1], 1
    %1494 = vst [vmem:[%s1493] ss:$4 sm:$0xff] %v1071
    %s1495 = scalar_lea.vmem [#allocation1], 2
    %1496 = vst [vmem:[%s1495] ss:$4 sm:$0xff] %v1073
    %s1497 = scalar_lea.vmem [#allocation1], 3
    %1498 = vst [vmem:[%s1497] ss:$4 sm:$0xff] %v1075
    %s1499 = scalar_lea.vmem [#allocation1], 32
    %1500 = vst [vmem:[%s1499] ss:$4 sm:$0xff] %v1077
    %s1501 = scalar_lea.vmem [#allocation1], 33
    %1502 = vst [vmem:[%s1501] ss:$4 sm:$0xff] %v1079
    %s1503 = scalar_lea.vmem [#allocation1], 34
    %1504 = vst [vmem:[%s1503] ss:$4 sm:$0xff] %v1081
    %s1505 = scalar_lea.vmem [#allocation1], 35
    %1506 = vst [vmem:[%s1505] ss:$4 sm:$0xff] %v1083
    %v1507 = vld.sshfl [vmem:[#allocation1] sm:$0xff pattern:$0x73625140]
    %v1508 = vld.sshfl [vmem:[#allocation1 + $0x20] sm:$0xff pattern:$0x73625140]
    %v1509 = vsel %vm1253, %v1491, 0
    %v1511 = vsel %vm1253, %v1507, 0
    %v1513 = vsel %vm1253, %v1508, 0
    %1515 = vmatpush.xpose.msra.mxu0 0.0
    %1516 = vmatpush.xpose.msra.mxu0 0.0
    %1517 = vmatpush.xpose.msra.mxu0 0.0
    %1518 = vmatpush.xpose.msra.mxu0 0.0
    %1519 = vmatpush.xpose.msra.mxu0 0.0
    %1520 = vmatpush.xpose.msra.mxu0 0.0
    %1521 = vmatpush.xpose.msra.mxu0 0.0
    %1522 = vmatpush.xpose.msra.mxu0 0.0
    %1523 = vmatpush.xpose.msra.mxu0 0.0
    %1524 = vmatpush.xpose.msra.mxu0 0.0
    %1525 = vmatpush.xpose.msra.mxu0 0.0
    %1526 = vmatpush.xpose.msra.mxu0 0.0
    %1527 = vmatpush.xpose.msra.mxu0 0.0
    %1528 = vmatpush.xpose.msra.mxu0 0.0
    %1529 = vmatpush.xpose.msra.mxu0 %v1513
    %1530 = vmatpush.xpose.msra.mxu0 %v1511
    %1531 = vmatmul.f32.gmra.mxu0 %v1509
    %v1532 = vpop.f32.mrf.mxu0
    %v1533 = vadd.f32 0.0, %v1532
    %1534 = vdwg.mxu0
    %1535 = vst [vmem:[#allocation1] ss:$4 sm:$0xff] %v989
    %s1536 = scalar_lea.vmem [#allocation1], 1
    %1537 = vst [vmem:[%s1536] ss:$4 sm:$0xff] %v991
    %s1538 = scalar_lea.vmem [#allocation1], 2
    %1539 = vst [vmem:[%s1538] ss:$4 sm:$0xff] %v993
    %s1540 = scalar_lea.vmem [#allocation1], 3
    %1541 = vst [vmem:[%s1540] ss:$4 sm:$0xff] %v995
    %v1542 = vld.sshfl [vmem:[#allocation1] sm:$0xff pattern:$0x73625140]
    %1543 = vst [vmem:[#allocation1] ss:$4 sm:$0xff] %v1085
    %s1544 = scalar_lea.vmem [#allocation1], 1
    %1545 = vst [vmem:[%s1544] ss:$4 sm:$0xff] %v1087
    %s1546 = scalar_lea.vmem [#allocation1], 2
    %1547 = vst [vmem:[%s1546] ss:$4 sm:$0xff] %v1089
    %s1548 = scalar_lea.vmem [#allocation1], 3
    %1549 = vst [vmem:[%s1548] ss:$4 sm:$0xff] %v1091
    %s1550 = scalar_lea.vmem [#allocation1], 32
    %1551 = vst [vmem:[%s1550] ss:$4 sm:$0xff] %v1093
    %s1552 = scalar_lea.vmem [#allocation1], 33
    %1553 = vst [vmem:[%s1552] ss:$4 sm:$0xff] %v1095
    %s1554 = scalar_lea.vmem [#allocation1], 34
    %1555 = vst [vmem:[%s1554] ss:$4 sm:$0xff] %v1097
    %s1556 = scalar_lea.vmem [#allocation1], 35
    %1557 = vst [vmem:[%s1556] ss:$4 sm:$0xff] %v1099
    %v1558 = vld.sshfl [vmem:[#allocation1] sm:$0xff pattern:$0x73625140]
    %v1559 = vld.sshfl [vmem:[#allocation1 + $0x20] sm:$0xff pattern:$0x73625140]
    %v1560 = vsel %vm1253, %v1542, 0
    %v1562 = vsel %vm1253, %v1558, 0
    %v1564 = vsel %vm1253, %v1559, 0
    %1566 = vmatpush.xpose.msra.mxu0 0.0
    %1567 = vmatpush.xpose.msra.mxu0 0.0
    %1568 = vmatpush.xpose.msra.mxu0 0.0
    %1569 = vmatpush.xpose.msra.mxu0 0.0
    %1570 = vmatpush.xpose.msra.mxu0 0.0
    %1571 = vmatpush.xpose.msra.mxu0 0.0
    %1572 = vmatpush.xpose.msra.mxu0 0.0
    %1573 = vmatpush.xpose.msra.mxu0 0.0
    %1574 = vmatpush.xpose.msra.mxu0 0.0
    %1575 = vmatpush.xpose.msra.mxu0 0.0
    %1576 = vmatpush.xpose.msra.mxu0 0.0
    %1577 = vmatpush.xpose.msra.mxu0 0.0
    %1578 = vmatpush.xpose.msra.mxu0 0.0
    %1579 = vmatpush.xpose.msra.mxu0 0.0
    %1580 = vmatpush.xpose.msra.mxu0 %v1564
    %1581 = vmatpush.xpose.msra.mxu0 %v1562
    %1582 = vmatmul.f32.gmra.mxu0 %v1560
    %v1583 = vpop.f32.mrf.mxu0
    %v1584 = vadd.f32 0.0, %v1583
    %1585 = vdwg.mxu0
    %1586 = vst [vmem:[#allocation1] ss:$4 sm:$0xff] %v997
    %s1587 = scalar_lea.vmem [#allocation1], 1
    %1588 = vst [vmem:[%s1587] ss:$4 sm:$0xff] %v999
    %s1589 = scalar_lea.vmem [#allocation1], 2
    %1590 = vst [vmem:[%s1589] ss:$4 sm:$0xff] %v1001
    %s1591 = scalar_lea.vmem [#allocation1], 3
    %1592 = vst [vmem:[%s1591] ss:$4 sm:$0xff] %v1003
    %v1593 = vld.sshfl [vmem:[#allocation1] sm:$0xff pattern:$0x73625140]
    %1594 = vst [vmem:[#allocation1] ss:$4 sm:$0xff] %v1101
    %s1595 = scalar_lea.vmem [#allocation1], 1
    %1596 = vst [vmem:[%s1595] ss:$4 sm:$0xff] %v1103
    %s1597 = scalar_lea.vmem [#allocation1], 2
    %1598 = vst [vmem:[%s1597] ss:$4 sm:$0xff] %v1105
    %s1599 = scalar_lea.vmem [#allocation1], 3
    %1600 = vst [vmem:[%s1599] ss:$4 sm:$0xff] %v1107
    %s1601 = scalar_lea.vmem [#allocation1], 32
    %1602 = vst [vmem:[%s1601] ss:$4 sm:$0xff] %v1109
    %s1603 = scalar_lea.vmem [#allocation1], 33
    %1604 = vst [vmem:[%s1603] ss:$4 sm:$0xff] %v1111
    %s1605 = scalar_lea.vmem [#allocation1], 34
    %1606 = vst [vmem:[%s1605] ss:$4 sm:$0xff] %v1113
    %s1607 = scalar_lea.vmem [#allocation1], 35
    %1608 = vst [vmem:[%s1607] ss:$4 sm:$0xff] %v1115
    %v1609 = vld.sshfl [vmem:[#allocation1] sm:$0xff pattern:$0x73625140]
    %v1610 = vld.sshfl [vmem:[#allocation1 + $0x20] sm:$0xff pattern:$0x73625140]
    %v1611 = vsel %vm1253, %v1593, 0
    %v1613 = vsel %vm1253, %v1609, 0
    %v1615 = vsel %vm1253, %v1610, 0
    %1617 = vmatpush.xpose.msra.mxu0 0.0
    %1618 = vmatpush.xpose.msra.mxu0 0.0
    %1619 = vmatpush.xpose.msra.mxu0 0.0
    %1620 = vmatpush.xpose.msra.mxu0 0.0
    %1621 = vmatpush.xpose.msra.mxu0 0.0
    %1622 = vmatpush.xpose.msra.mxu0 0.0
    %1623 = vmatpush.xpose.msra.mxu0 0.0
    %1624 = vmatpush.xpose.msra.mxu0 0.0
    %1625 = vmatpush.xpose.msra.mxu0 0.0
    %1626 = vmatpush.xpose.msra.mxu0 0.0
    %1627 = vmatpush.xpose.msra.mxu0 0.0
    %1628 = vmatpush.xpose.msra.mxu0 0.0
    %1629 = vmatpush.xpose.msra.mxu0 0.0
    %1630 = vmatpush.xpose.msra.mxu0 0.0
    %1631 = vmatpush.xpose.msra.mxu0 %v1615
    %1632 = vmatpush.xpose.msra.mxu0 %v1613
    %1633 = vmatmul.f32.gmra.mxu0 %v1611
    %v1634 = vpop.f32.mrf.mxu0
    %v1635 = vadd.f32 0.0, %v1634
    %1636 = vdwg.mxu0
    %vm1637 = vcmask 130048
    %v1638 = vsel %vm1637, %v1278, -inf
    %1639 = vmax.xlane.f32.xlu0 %v1638
    %v1640 = vpop.xlane.xlu0 %1639
    %v1641 = vsel %vm1637, %v1329, -inf
    %1642 = vmax.xlane.f32.xlu0 %v1641
    %v1643 = vpop.xlane.xlu0 %1642
    %v1644 = vsel %vm1637, %v1380, -inf
    %1645 = vmax.xlane.f32.xlu0 %v1644
    %v1646 = vpop.xlane.xlu0 %1645
    %v1647 = vsel %vm1637, %v1431, -inf
    %1648 = vmax.xlane.f32.xlu0 %v1647
    %v1649 = vpop.xlane.xlu0 %1648
    %v1650 = vsel %vm1637, %v1482, -inf
    %1651 = vmax.xlane.f32.xlu0 %v1650
    %v1652 = vpop.xlane.xlu0 %1651
    %v1653 = vsel %vm1637, %v1533, -inf
    %1654 = vmax.xlane.f32.xlu0 %v1653
    %v1655 = vpop.xlane.xlu0 %1654
    %v1656 = vsel %vm1637, %v1584, -inf
    %1657 = vmax.xlane.f32.xlu0 %v1656
    %v1658 = vpop.xlane.xlu0 %1657
    %v1659 = vsel %vm1637, %v1635, -inf
    %1660 = vmax.xlane.f32.xlu0 %v1659
    %v1661 = vpop.xlane.xlu0 %1660
    %v1662 = vsub.f32 %v1278, %v1640
    %v1663 = vsub.f32 %v1329, %v1643
    %v1664 = vsub.f32 %v1380, %v1646
    %v1665 = vsub.f32 %v1431, %v1649
    %v1666 = vsub.f32 %v1482, %v1652
    %v1667 = vsub.f32 %v1533, %v1655
    %v1668 = vsub.f32 %v1584, %v1658
    %v1669 = vsub.f32 %v1635, %v1661
    %v1670 = vmul.f32 %v1662, 1.442695
    %v1671 = vpow.pop %v1670
    %v1672 = vmul.f32 %v1663, 1.442695
    %v1673 = vpow.pop %v1672
    %v1674 = vmul.f32 %v1664, 1.442695
    %v1675 = vpow.pop %v1674
    %v1676 = vmul.f32 %v1665, 1.442695
    %v1677 = vpow.pop %v1676
    %v1678 = vmul.f32 %v1666, 1.442695
    %v1679 = vpow.pop %v1678
    %v1680 = vmul.f32 %v1667, 1.442695
    %v1681 = vpow.pop %v1680
    %v1682 = vmul.f32 %v1668, 1.442695
    %v1683 = vpow.pop %v1682
    %v1684 = vmul.f32 %v1669, 1.442695
    %v1685 = vpow.pop %v1684
    %v1686 = vsel %vm1637, %v1671, 0.0
    %1687 = vadd.xlane.f32.xlu0 %v1686
    %v1688 = vpop.xlane.xlu0 %1687
    %v1689 = vsel %vm1637, %v1673, 0.0
    %1690 = vadd.xlane.f32.xlu0 %v1689
    %v1691 = vpop.xlane.xlu0 %1690
    %v1692 = vsel %vm1637, %v1675, 0.0
    %1693 = vadd.xlane.f32.xlu0 %v1692
    %v1694 = vpop.xlane.xlu0 %1693
    %v1695 = vsel %vm1637, %v1677, 0.0
    %1696 = vadd.xlane.f32.xlu0 %v1695
    %v1697 = vpop.xlane.xlu0 %1696
    %v1698 = vsel %vm1637, %v1679, 0.0
    %1699 = vadd.xlane.f32.xlu0 %v1698
    %v1700 = vpop.xlane.xlu0 %1699
    %v1701 = vsel %vm1637, %v1681, 0.0
    %1702 = vadd.xlane.f32.xlu0 %v1701
    %v1703 = vpop.xlane.xlu0 %1702
    %v1704 = vsel %vm1637, %v1683, 0.0
    %1705 = vadd.xlane.f32.xlu0 %v1704
    %v1706 = vpop.xlane.xlu0 %1705
    %v1707 = vsel %vm1637, %v1685, 0.0
    %1708 = vadd.xlane.f32.xlu0 %v1707
    %v1709 = vpop.xlane.xlu0 %1708
    %v1710 = vrcp.pop %v1688
    %v1711 = vrcp.pop %v1691
    %v1712 = vrcp.pop %v1694
    %v1713 = vrcp.pop %v1697
    %v1714 = vrcp.pop %v1700
    %v1715 = vrcp.pop %v1703
    %v1716 = vrcp.pop %v1706
    %v1717 = vrcp.pop %v1709
    %v1718 = vmul.f32 %v1671, %v1710
    %v1719 = vmul.f32 %v1673, %v1711
    %v1720 = vmul.f32 %v1675, %v1712
    %v1721 = vmul.f32 %v1677, %v1713
    %v1722 = vmul.f32 %v1679, %v1714
    %v1723 = vmul.f32 %v1681, %v1715
    %v1724 = vmul.f32 %v1683, %v1716
    %v1725 = vmul.f32 %v1685, %v1717
    %1726 = vst [vmem:[#allocation1] ss:$4 sm:$0xff] %v889
    %s1727 = scalar_lea.vmem [#allocation1], 1
    %1728 = vst [vmem:[%s1727] ss:$4 sm:$0xff] %v897
    %s1729 = scalar_lea.vmem [#allocation1], 2
    %1730 = vst [vmem:[%s1729] ss:$4 sm:$0xff] %v905
    %s1731 = scalar_lea.vmem [#allocation1], 3
    %1732 = vst [vmem:[%s1731] ss:$4 sm:$0xff] %v913
    %s1733 = scalar_lea.vmem [#allocation1], 32
    %1734 = vst [vmem:[%s1733] ss:$4 sm:$0xff] %v921
    %s1735 = scalar_lea.vmem [#allocation1], 33
    %1736 = vst [vmem:[%s1735] ss:$4 sm:$0xff] %v929
    %s1737 = scalar_lea.vmem [#allocation1], 34
    %1738 = vst [vmem:[%s1737] ss:$4 sm:$0xff] %v937
    %s1739 = scalar_lea.vmem [#allocation1], 35
    %1740 = vst [vmem:[%s1739] ss:$4 sm:$0xff] %v945
    %v1741 = vld.sshfl [vmem:[#allocation1] sm:$0xff pattern:$0x73625140]
    %v1742 = vld.sshfl [vmem:[#allocation1 + $0x20] sm:$0xff pattern:$0x73625140]
    %v1746 = vsel %vm1637, %v1718, 0
    %1748 = vmatpush.msra.mxu0 0.0
    %1749 = vmatpush.msra.mxu0 0.0
    %1750 = vmatpush.msra.mxu0 0.0
    %1751 = vmatpush.msra.mxu0 0.0
    %1752 = vmatpush.msra.mxu0 0.0
    %1753 = vmatpush.msra.mxu0 0.0
    %1754 = vmatpush.msra.mxu0 0.0
    %1755 = vmatpush.msra.mxu0 0.0
    %1756 = vmatpush.msra.mxu0 0.0
    %1757 = vmatpush.msra.mxu0 0.0
    %1758 = vmatpush.msra.mxu0 0.0
    %1759 = vmatpush.msra.mxu0 0.0
    %1760 = vmatpush.msra.mxu0 0.0
    %1761 = vmatpush.msra.mxu0 0.0
    %1762 = vmatpush.msra.mxu0 %v1742
    %1763 = vmatpush.msra.mxu0 %v1741
    %1764 = vmatmul.f32.gmra.mxu0 %v1746
    %v1765 = vpop.f32.mrf.mxu0
    %v1766 = vadd.f32 0.0, %v1765
    %1767 = vdwg.mxu0
    %1768 = vst [vmem:[#allocation1] ss:$4 sm:$0xff] %v891
    %s1769 = scalar_lea.vmem [#allocation1], 1
    %1770 = vst [vmem:[%s1769] ss:$4 sm:$0xff] %v899
    %s1771 = scalar_lea.vmem [#allocation1], 2
    %1772 = vst [vmem:[%s1771] ss:$4 sm:$0xff] %v907
    %s1773 = scalar_lea.vmem [#allocation1], 3
    %1774 = vst [vmem:[%s1773] ss:$4 sm:$0xff] %v915
    %s1775 = scalar_lea.vmem [#allocation1], 32
    %1776 = vst [vmem:[%s1775] ss:$4 sm:$0xff] %v923
    %s1777 = scalar_lea.vmem [#allocation1], 33
    %1778 = vst [vmem:[%s1777] ss:$4 sm:$0xff] %v931
    %s1779 = scalar_lea.vmem [#allocation1], 34
    %1780 = vst [vmem:[%s1779] ss:$4 sm:$0xff] %v939
    %s1781 = scalar_lea.vmem [#allocation1], 35
    %1782 = vst [vmem:[%s1781] ss:$4 sm:$0xff] %v947
    %v1783 = vld.sshfl [vmem:[#allocation1] sm:$0xff pattern:$0x73625140]
    %v1784 = vld.sshfl [vmem:[#allocation1 + $0x20] sm:$0xff pattern:$0x73625140]
    %v1788 = vsel %vm1637, %v1719, 0
    %1790 = vmatpush.msra.mxu0 0.0
    %1791 = vmatpush.msra.mxu0 0.0
    %1792 = vmatpush.msra.mxu0 0.0
    %1793 = vmatpush.msra.mxu0 0.0
    %1794 = vmatpush.msra.mxu0 0.0
    %1795 = vmatpush.msra.mxu0 0.0
    %1796 = vmatpush.msra.mxu0 0.0
    %1797 = vmatpush.msra.mxu0 0.0
    %1798 = vmatpush.msra.mxu0 0.0
    %1799 = vmatpush.msra.mxu0 0.0
    %1800 = vmatpush.msra.mxu0 0.0
    %1801 = vmatpush.msra.mxu0 0.0
    %1802 = vmatpush.msra.mxu0 0.0
    %1803 = vmatpush.msra.mxu0 0.0
    %1804 = vmatpush.msra.mxu0 %v1784
    %1805 = vmatpush.msra.mxu0 %v1783
    %1806 = vmatmul.f32.gmra.mxu0 %v1788
    %v1807 = vpop.f32.mrf.mxu0
    %v1808 = vadd.f32 0.0, %v1807
    %1809 = vdwg.mxu0
    %1810 = vst [vmem:[#allocation1] ss:$4 sm:$0xff] %v1133
    %s1811 = scalar_lea.vmem [#allocation1], 1
    %1812 = vst [vmem:[%s1811] ss:$4 sm:$0xff] %v1135
    %s1813 = scalar_lea.vmem [#allocation1], 2
    %1814 = vst [vmem:[%s1813] ss:$4 sm:$0xff] %v1137
    %s1815 = scalar_lea.vmem [#allocation1], 3
    %1816 = vst [vmem:[%s1815] ss:$4 sm:$0xff] %v1139
    %s1817 = scalar_lea.vmem [#allocation1], 32
    %1818 = vst [vmem:[%s1817] ss:$4 sm:$0xff] %v1141
    %s1819 = scalar_lea.vmem [#allocation1], 33
    %1820 = vst [vmem:[%s1819] ss:$4 sm:$0xff] %v1143
    %s1821 = scalar_lea.vmem [#allocation1], 34
    %1822 = vst [vmem:[%s1821] ss:$4 sm:$0xff] %v1145
    %s1823 = scalar_lea.vmem [#allocation1], 35
    %1824 = vst [vmem:[%s1823] ss:$4 sm:$0xff] %v1147
    %v1825 = vld.sshfl [vmem:[#allocation1] sm:$0xff pattern:$0x73625140]
    %v1826 = vld.sshfl [vmem:[#allocation1 + $0x20] sm:$0xff pattern:$0x73625140]
    %v1830 = vsel %vm1637, %v1720, 0
    %1832 = vmatpush.msra.mxu0 0.0
    %1833 = vmatpush.msra.mxu0 0.0
    %1834 = vmatpush.msra.mxu0 0.0
    %1835 = vmatpush.msra.mxu0 0.0
    %1836 = vmatpush.msra.mxu0 0.0
    %1837 = vmatpush.msra.mxu0 0.0
    %1838 = vmatpush.msra.mxu0 0.0
    %1839 = vmatpush.msra.mxu0 0.0
    %1840 = vmatpush.msra.mxu0 0.0
    %1841 = vmatpush.msra.mxu0 0.0
    %1842 = vmatpush.msra.mxu0 0.0
    %1843 = vmatpush.msra.mxu0 0.0
    %1844 = vmatpush.msra.mxu0 0.0
    %1845 = vmatpush.msra.mxu0 0.0
    %1846 = vmatpush.msra.mxu0 %v1826
    %1847 = vmatpush.msra.mxu0 %v1825
    %1848 = vmatmul.f32.gmra.mxu0 %v1830
    %v1849 = vpop.f32.mrf.mxu0
    %v1850 = vadd.f32 0.0, %v1849
    %1851 = vdwg.mxu0
    %1852 = vst [vmem:[#allocation1] ss:$4 sm:$0xff] %v1149
    %s1853 = scalar_lea.vmem [#allocation1], 1
    %1854 = vst [vmem:[%s1853] ss:$4 sm:$0xff] %v1151
    %s1855 = scalar_lea.vmem [#allocation1], 2
    %1856 = vst [vmem:[%s1855] ss:$4 sm:$0xff] %v1153
    %s1857 = scalar_lea.vmem [#allocation1], 3
    %1858 = vst [vmem:[%s1857] ss:$4 sm:$0xff] %v1155
    %s1859 = scalar_lea.vmem [#allocation1], 32
    %1860 = vst [vmem:[%s1859] ss:$4 sm:$0xff] %v1157
    %s1861 = scalar_lea.vmem [#allocation1], 33
    %1862 = vst [vmem:[%s1861] ss:$4 sm:$0xff] %v1159
    %s1863 = scalar_lea.vmem [#allocation1], 34
    %1864 = vst [vmem:[%s1863] ss:$4 sm:$0xff] %v1161
    %s1865 = scalar_lea.vmem [#allocation1], 35
    %1866 = vst [vmem:[%s1865] ss:$4 sm:$0xff] %v1163
    %v1867 = vld.sshfl [vmem:[#allocation1] sm:$0xff pattern:$0x73625140]
    %v1868 = vld.sshfl [vmem:[#allocation1 + $0x20] sm:$0xff pattern:$0x73625140]
    %v1872 = vsel %vm1637, %v1721, 0
    %1874 = vmatpush.msra.mxu0 0.0
    %1875 = vmatpush.msra.mxu0 0.0
    %1876 = vmatpush.msra.mxu0 0.0
    %1877 = vmatpush.msra.mxu0 0.0
    %1878 = vmatpush.msra.mxu0 0.0
    %1879 = vmatpush.msra.mxu0 0.0
    %1880 = vmatpush.msra.mxu0 0.0
    %1881 = vmatpush.msra.mxu0 0.0
    %1882 = vmatpush.msra.mxu0 0.0
    %1883 = vmatpush.msra.mxu0 0.0
    %1884 = vmatpush.msra.mxu0 0.0
    %1885 = vmatpush.msra.mxu0 0.0
    %1886 = vmatpush.msra.mxu0 0.0
    %1887 = vmatpush.msra.mxu0 0.0
    %1888 = vmatpush.msra.mxu0 %v1868
    %1889 = vmatpush.msra.mxu0 %v1867
    %1890 = vmatmul.f32.gmra.mxu0 %v1872
    %v1891 = vpop.f32.mrf.mxu0
    %v1892 = vadd.f32 0.0, %v1891
    %1893 = vdwg.mxu0
    %1894 = vst [vmem:[#allocation1] ss:$4 sm:$0xff] %v1165
    %s1895 = scalar_lea.vmem [#allocation1], 1
    %1896 = vst [vmem:[%s1895] ss:$4 sm:$0xff] %v1167
    %s1897 = scalar_lea.vmem [#allocation1], 2
    %1898 = vst [vmem:[%s1897] ss:$4 sm:$0xff] %v1169
    %s1899 = scalar_lea.vmem [#allocation1], 3
    %1900 = vst [vmem:[%s1899] ss:$4 sm:$0xff] %v1171
    %s1901 = scalar_lea.vmem [#allocation1], 32
    %1902 = vst [vmem:[%s1901] ss:$4 sm:$0xff] %v1173
    %s1903 = scalar_lea.vmem [#allocation1], 33
    %1904 = vst [vmem:[%s1903] ss:$4 sm:$0xff] %v1175
    %s1905 = scalar_lea.vmem [#allocation1], 34
    %1906 = vst [vmem:[%s1905] ss:$4 sm:$0xff] %v1177
    %s1907 = scalar_lea.vmem [#allocation1], 35
    %1908 = vst [vmem:[%s1907] ss:$4 sm:$0xff] %v1179
    %v1909 = vld.sshfl [vmem:[#allocation1] sm:$0xff pattern:$0x73625140]
    %v1910 = vld.sshfl [vmem:[#allocation1 + $0x20] sm:$0xff pattern:$0x73625140]
    %v1914 = vsel %vm1637, %v1722, 0
    %1916 = vmatpush.msra.mxu0 0.0
    %1917 = vmatpush.msra.mxu0 0.0
    %1918 = vmatpush.msra.mxu0 0.0
    %1919 = vmatpush.msra.mxu0 0.0
    %1920 = vmatpush.msra.mxu0 0.0
    %1921 = vmatpush.msra.mxu0 0.0
    %1922 = vmatpush.msra.mxu0 0.0
    %1923 = vmatpush.msra.mxu0 0.0
    %1924 = vmatpush.msra.mxu0 0.0
    %1925 = vmatpush.msra.mxu0 0.0
    %1926 = vmatpush.msra.mxu0 0.0
    %1927 = vmatpush.msra.mxu0 0.0
    %1928 = vmatpush.msra.mxu0 0.0
    %1929 = vmatpush.msra.mxu0 0.0
    %1930 = vmatpush.msra.mxu0 %v1910
    %1931 = vmatpush.msra.mxu0 %v1909
    %1932 = vmatmul.f32.gmra.mxu0 %v1914
    %v1933 = vpop.f32.mrf.mxu0
    %v1934 = vadd.f32 0.0, %v1933
    %1935 = vdwg.mxu0
    %1936 = vst [vmem:[#allocation1] ss:$4 sm:$0xff] %v1181
    %s1937 = scalar_lea.vmem [#allocation1], 1
    %1938 = vst [vmem:[%s1937] ss:$4 sm:$0xff] %v1183
    %s1939 = scalar_lea.vmem [#allocation1], 2
    %1940 = vst [vmem:[%s1939] ss:$4 sm:$0xff] %v1185
    %s1941 = scalar_lea.vmem [#allocation1], 3
    %1942 = vst [vmem:[%s1941] ss:$4 sm:$0xff] %v1187
    %s1943 = scalar_lea.vmem [#allocation1], 32
    %1944 = vst [vmem:[%s1943] ss:$4 sm:$0xff] %v1189
    %s1945 = scalar_lea.vmem [#allocation1], 33
    %1946 = vst [vmem:[%s1945] ss:$4 sm:$0xff] %v1191
    %s1947 = scalar_lea.vmem [#allocation1], 34
    %1948 = vst [vmem:[%s1947] ss:$4 sm:$0xff] %v1193
    %s1949 = scalar_lea.vmem [#allocation1], 35
    %1950 = vst [vmem:[%s1949] ss:$4 sm:$0xff] %v1195
    %v1951 = vld.sshfl [vmem:[#allocation1] sm:$0xff pattern:$0x73625140]
    %v1952 = vld.sshfl [vmem:[#allocation1 + $0x20] sm:$0xff pattern:$0x73625140]
    %v1956 = vsel %vm1637, %v1723, 0
    %1958 = vmatpush.msra.mxu0 0.0
    %1959 = vmatpush.msra.mxu0 0.0
    %1960 = vmatpush.msra.mxu0 0.0
    %1961 = vmatpush.msra.mxu0 0.0
    %1962 = vmatpush.msra.mxu0 0.0
    %1963 = vmatpush.msra.mxu0 0.0
    %1964 = vmatpush.msra.mxu0 0.0
    %1965 = vmatpush.msra.mxu0 0.0
    %1966 = vmatpush.msra.mxu0 0.0
    %1967 = vmatpush.msra.mxu0 0.0
    %1968 = vmatpush.msra.mxu0 0.0
    %1969 = vmatpush.msra.mxu0 0.0
    %1970 = vmatpush.msra.mxu0 0.0
    %1971 = vmatpush.msra.mxu0 0.0
    %1972 = vmatpush.msra.mxu0 %v1952
    %1973 = vmatpush.msra.mxu0 %v1951
    %1974 = vmatmul.f32.gmra.mxu0 %v1956
    %v1975 = vpop.f32.mrf.mxu0
    %v1976 = vadd.f32 0.0, %v1975
    %1977 = vdwg.mxu0
    %1978 = vst [vmem:[#allocation1] ss:$4 sm:$0xff] %v1197
    %s1979 = scalar_lea.vmem [#allocation1], 1
    %1980 = vst [vmem:[%s1979] ss:$4 sm:$0xff] %v1199
    %s1981 = scalar_lea.vmem [#allocation1], 2
    %1982 = vst [vmem:[%s1981] ss:$4 sm:$0xff] %v1201
    %s1983 = scalar_lea.vmem [#allocation1], 3
    %1984 = vst [vmem:[%s1983] ss:$4 sm:$0xff] %v1203
    %s1985 = scalar_lea.vmem [#allocation1], 32
    %1986 = vst [vmem:[%s1985] ss:$4 sm:$0xff] %v1205
    %s1987 = scalar_lea.vmem [#allocation1], 33
    %1988 = vst [vmem:[%s1987] ss:$4 sm:$0xff] %v1207
    %s1989 = scalar_lea.vmem [#allocation1], 34
    %1990 = vst [vmem:[%s1989] ss:$4 sm:$0xff] %v1209
    %s1991 = scalar_lea.vmem [#allocation1], 35
    %1992 = vst [vmem:[%s1991] ss:$4 sm:$0xff] %v1211
    %v1993 = vld.sshfl [vmem:[#allocation1] sm:$0xff pattern:$0x73625140]
    %v1994 = vld.sshfl [vmem:[#allocation1 + $0x20] sm:$0xff pattern:$0x73625140]
    %v1998 = vsel %vm1637, %v1724, 0
    %2000 = vmatpush.msra.mxu0 0.0
    %2001 = vmatpush.msra.mxu0 0.0
    %2002 = vmatpush.msra.mxu0 0.0
    %2003 = vmatpush.msra.mxu0 0.0
    %2004 = vmatpush.msra.mxu0 0.0
    %2005 = vmatpush.msra.mxu0 0.0
    %2006 = vmatpush.msra.mxu0 0.0
    %2007 = vmatpush.msra.mxu0 0.0
    %2008 = vmatpush.msra.mxu0 0.0
    %2009 = vmatpush.msra.mxu0 0.0
    %2010 = vmatpush.msra.mxu0 0.0
    %2011 = vmatpush.msra.mxu0 0.0
    %2012 = vmatpush.msra.mxu0 0.0
    %2013 = vmatpush.msra.mxu0 0.0
    %2014 = vmatpush.msra.mxu0 %v1994
    %2015 = vmatpush.msra.mxu0 %v1993
    %2016 = vmatmul.f32.gmra.mxu0 %v1998
    %v2017 = vpop.f32.mrf.mxu0
    %v2018 = vadd.f32 0.0, %v2017
    %2019 = vdwg.mxu0
    %2020 = vst [vmem:[#allocation1] ss:$4 sm:$0xff] %v1213
    %s2021 = scalar_lea.vmem [#allocation1], 1
    %2022 = vst [vmem:[%s2021] ss:$4 sm:$0xff] %v1215
    %s2023 = scalar_lea.vmem [#allocation1], 2
    %2024 = vst [vmem:[%s2023] ss:$4 sm:$0xff] %v1217
    %s2025 = scalar_lea.vmem [#allocation1], 3
    %2026 = vst [vmem:[%s2025] ss:$4 sm:$0xff] %v1219
    %s2027 = scalar_lea.vmem [#allocation1], 32
    %2028 = vst [vmem:[%s2027] ss:$4 sm:$0xff] %v1221
    %s2029 = scalar_lea.vmem [#allocation1], 33
    %2030 = vst [vmem:[%s2029] ss:$4 sm:$0xff] %v1223
    %s2031 = scalar_lea.vmem [#allocation1], 34
    %2032 = vst [vmem:[%s2031] ss:$4 sm:$0xff] %v1225
    %s2033 = scalar_lea.vmem [#allocation1], 35
    %2034 = vst [vmem:[%s2033] ss:$4 sm:$0xff] %v1227
    %v2035 = vld.sshfl [vmem:[#allocation1] sm:$0xff pattern:$0x73625140]
    %v2036 = vld.sshfl [vmem:[#allocation1 + $0x20] sm:$0xff pattern:$0x73625140]
    %v2040 = vsel %vm1637, %v1725, 0
    %2042 = vmatpush.msra.mxu0 0.0
    %2043 = vmatpush.msra.mxu0 0.0
    %2044 = vmatpush.msra.mxu0 0.0
    %2045 = vmatpush.msra.mxu0 0.0
    %2046 = vmatpush.msra.mxu0 0.0
    %2047 = vmatpush.msra.mxu0 0.0
    %2048 = vmatpush.msra.mxu0 0.0
    %2049 = vmatpush.msra.mxu0 0.0
    %2050 = vmatpush.msra.mxu0 0.0
    %2051 = vmatpush.msra.mxu0 0.0
    %2052 = vmatpush.msra.mxu0 0.0
    %2053 = vmatpush.msra.mxu0 0.0
    %2054 = vmatpush.msra.mxu0 0.0
    %2055 = vmatpush.msra.mxu0 0.0
    %2056 = vmatpush.msra.mxu0 %v2036
    %2057 = vmatpush.msra.mxu0 %v2035
    %2058 = vmatmul.f32.gmra.mxu0 %v2040
    %v2059 = vpop.f32.mrf.mxu0
    %v2060 = vadd.f32 0.0, %v2059
    %2061 = vdwg.mxu0
    %2064 = vrot.lane.b32.xlu0 %v1850, 8
    %v2065 = vpop.permute.xlu0 %2064
    %2066 = vrot.lane.b32.xlu0 %v1892, 8
    %v2067 = vpop.permute.xlu0 %2066
    %2072 = vrot.lane.b32.xlu0 %v1934, 16
    %v2073 = vpop.permute.xlu0 %2072
    %2074 = vrot.lane.b32.xlu0 %v1976, 16
    %v2075 = vpop.permute.xlu0 %2074
    %2080 = vrot.lane.b32.xlu0 %v2018, 24
    %v2081 = vpop.permute.xlu0 %2080
    %2082 = vrot.lane.b32.xlu0 %v2060, 24
    %v2083 = vpop.permute.xlu0 %2082
    %v2086 = vsel %vm1253, %v1766, %v2065
    %v2087 = vsel %vm1253, %v1808, %v2067
    %v2088 = vsel %vm1637, %v2086, %v2073
    %v2089 = vsel %vm1637, %v2087, %v2075
    %vm2090 = vcmask 195584
    %v2091 = vsel %vm2090, %v2088, %v2081
    %v2092 = vsel %vm2090, %v2089, %v2083
    %v2093 = vrot.slane %v2091, 4
    %v2094 = vsel %vm732, 0.0, %v2093
    %v2096 = vunpack.c.l.s4 1983009808
    %v2097 = vunpack.c.0.s8 %v2096
    %v2098 = vperm.slane %v2091, %v2097
    %v2100 = vunpack.c.l.s4 1983009808
    %v2101 = vunpack.c.0.s8 %v2100
    %v2102 = vperm.slane %v2094, %v2101
    %v2103 = vrot.slane %v2092, 4
    %v2104 = vsel %vm732, 0.0, %v2103
    %v2106 = vunpack.c.l.s4 1983009808
    %v2107 = vunpack.c.0.s8 %v2106
    %v2108 = vperm.slane %v2092, %v2107
    %v2110 = vunpack.c.l.s4 1983009808
    %v2111 = vunpack.c.0.s8 %v2110
    %v2112 = vperm.slane %v2104, %v2111
    %v2113 = vrot.slane %v2108, 4
    %v2114 = vsel %vm732, %v2113, %v2098
    %v2115 = vrot.slane %v2098, 4
    %v2116 = vsel %vm732, %v2108, %v2115
    %v2118 = vunpack.c.l.s4 1934713408
    %v2119 = vunpack.c.0.s8 %v2118
    %v2120 = vperm.slane %v2114, %v2119
    %v2122 = vunpack.c.l.s4 1934713408
    %v2123 = vunpack.c.0.s8 %v2122
    %v2124 = vperm.slane %v2116, %v2123
    %v2125 = vrot.slane %v2112, 4
    %v2126 = vsel %vm732, %v2125, %v2102
    %v2127 = vrot.slane %v2102, 4
    %v2128 = vsel %vm732, %v2112, %v2127
    %v2130 = vunpack.c.l.s4 1934713408
    %v2131 = vunpack.c.0.s8 %v2130
    %v2132 = vperm.slane %v2126, %v2131
    %v2134 = vunpack.c.l.s4 1934713408
    %v2135 = vunpack.c.0.s8 %v2134
    %v2136 = vperm.slane %v2128, %v2135
    %v2137 = vrot.slane %v2120, 4
    %v2138 = vsel %vm732, 0.0, %v2137
    %v2139 = vrot.slane %v2124, 4
    %v2140 = vsel %vm732, 0.0, %v2139
    %v2141 = vrot.slane %v2132, 4
    %v2142 = vsel %vm732, 0.0, %v2141
    %v2143 = vrot.slane %v2136, 4
    %v2144 = vsel %vm732, 0.0, %v2143
    %v2145 = vld [vmem:[#allocation8] sm:$0xff]
    %v2146 = vld [vmem:[#allocation8 + $0x8] sm:$0xff]
    %v2147 = vld [vmem:[#allocation8 + $0x10] sm:$0xff]
    %v2148 = vld [vmem:[#allocation8 + $0x18] sm:$0xff]
    %v2149 = vld [vmem:[%s14] sm:$0x1]
    %v2151 = vperm.slane %v2149, 0
    %2161 = vst [vmem:[#allocation1] ss:$4 sm:$0xff] %v2120
    %s2162 = scalar_lea.vmem [#allocation1], 1
    %2163 = vst [vmem:[%s2162] ss:$4 sm:$0xff] %v2138
    %s2164 = scalar_lea.vmem [#allocation1], 2
    %2165 = vst [vmem:[%s2164] ss:$4 sm:$0xff] %v2124
    %s2166 = scalar_lea.vmem [#allocation1], 3
    %2167 = vst [vmem:[%s2166] ss:$4 sm:$0xff] %v2140
    %s2168 = scalar_lea.vmem [#allocation1], 32
    %2169 = vst [vmem:[%s2168] ss:$4 sm:$0xff] %v2132
    %s2170 = scalar_lea.vmem [#allocation1], 33
    %2171 = vst [vmem:[%s2170] ss:$4 sm:$0xff] %v2142
    %s2172 = scalar_lea.vmem [#allocation1], 34
    %2173 = vst [vmem:[%s2172] ss:$4 sm:$0xff] %v2136
    %s2174 = scalar_lea.vmem [#allocation1], 35
    %2175 = vst [vmem:[%s2174] ss:$4 sm:$0xff] %v2144
    %v2176 = vld.sshfl [vmem:[#allocation1] sm:$0xff pattern:$0x73625140]
    %v2177 = vld.sshfl [vmem:[#allocation1 + $0x20] sm:$0xff pattern:$0x73625140]
    %v2178 = vsel %vm216, %v2176, 0
    %v2180 = vsel %vm216, %v2177, 0
    %2182 = vmatpush.msra.mxu0 0.0
    %2183 = vmatpush.msra.mxu0 0.0
    %2184 = vmatpush.msra.mxu0 0.0
    %2185 = vmatpush.msra.mxu0 0.0
    %2186 = vmatpush.msra.mxu0 0.0
    %2187 = vmatpush.msra.mxu0 0.0
    %2188 = vmatpush.msra.mxu0 0.0
    %2189 = vmatpush.msra.mxu0 0.0
    %2190 = vmatpush.msra.mxu0 0.0
    %2191 = vmatpush.msra.mxu0 0.0
    %2192 = vmatpush.msra.mxu0 0.0
    %2193 = vmatpush.msra.mxu0 0.0
    %2194 = vmatpush.msra.mxu0 %v2148
    %2195 = vmatpush.msra.mxu0 %v2147
    %2196 = vmatpush.msra.mxu0 %v2146
    %2197 = vmatpush.msra.mxu0 %v2145
    %2198 = vmatmul.f32.gmra.mxu0 %v2178
    %v2199 = vpop.f32.mrf.mxu0
    %v2200 = vadd.f32 %v2151, %v2199
    %2201 = vmatmul.f32.gmra.mxu0 %v2180
    %v2202 = vpop.f32.mrf.mxu0
    %v2203 = vadd.f32 %v2151, %v2202
    %2204 = vdwg.mxu0
    %v2207 = vrot.slane %v2200, 2
    %v2208 = vrot.slane %v2200, 4
    %v2209 = vrot.slane %v2200, 6
    %v2210 = vrot.slane %v2203, 2
    %v2211 = vrot.slane %v2203, 4
    %v2212 = vrot.slane %v2203, 6
    %v2219 = vadd.f32 %v147, %v2200
    %v2220 = vadd.f32 %v148, %v2207
    %v2221 = vadd.f32 %v149, %v2208
    %v2222 = vadd.f32 %v150, %v2209
    %v2223 = vadd.f32 %v151, %v2203
    %v2224 = vadd.f32 %v152, %v2210
    %v2225 = vadd.f32 %v153, %v2211
    %v2226 = vadd.f32 %v154, %v2212
    %v2227 = vld [vmem:[%s15] sm:$0x1]
    %v2228 = vld [vmem:[%s16] sm:$0x1]
    %2237 = vst [vmem:[#allocation1] ss:$4 sm:$0xff] %v2219
    %s2238 = scalar_lea.vmem [#allocation1], 1
    %2239 = vst [vmem:[%s2238] ss:$4 sm:$0xff] %v2220
    %s2240 = scalar_lea.vmem [#allocation1], 2
    %2241 = vst [vmem:[%s2240] ss:$4 sm:$0xff] %v2221
    %s2242 = scalar_lea.vmem [#allocation1], 3
    %2243 = vst [vmem:[%s2242] ss:$4 sm:$0xff] %v2222
    %s2244 = scalar_lea.vmem [#allocation1], 32
    %2245 = vst [vmem:[%s2244] ss:$4 sm:$0xff] %v2223
    %s2246 = scalar_lea.vmem [#allocation1], 33
    %2247 = vst [vmem:[%s2246] ss:$4 sm:$0xff] %v2224
    %s2248 = scalar_lea.vmem [#allocation1], 34
    %2249 = vst [vmem:[%s2248] ss:$4 sm:$0xff] %v2225
    %s2250 = scalar_lea.vmem [#allocation1], 35
    %2251 = vst [vmem:[%s2250] ss:$4 sm:$0xff] %v2226
    %v2252 = vld.sshfl [vmem:[#allocation1] sm:$0xff pattern:$0x73625140]
    %v2253 = vld.sshfl [vmem:[#allocation1 + $0x20] sm:$0xff pattern:$0x73625140]
    %v2256 = vsel %vm216, %v2252, 0.0
    %2257 = vadd.xlane.f32.xlu0 %v2256
    %v2258 = vpop.xlane.xlu0 %2257
    %v2259 = vsel %vm216, %v2253, 0.0
    %2260 = vadd.xlane.f32.xlu0 %v2259
    %v2261 = vpop.xlane.xlu0 %2260
    %v2262 = vmul.f32 %v2258, %v229
    %v2263 = vmul.f32 %v2261, %v229
    %v2267 = vunpack.c.l.s4 269488144
    %v2268 = vunpack.c.0.s8 %v2267
    %v2269 = vperm.slane %v2262, %v2268
    %v2271 = vunpack.c.l.s4 842150450
    %v2272 = vunpack.c.0.s8 %v2271
    %v2273 = vperm.slane %v2262, %v2272
    %v2275 = vunpack.c.l.s4 1414812756
    %v2276 = vunpack.c.0.s8 %v2275
    %v2277 = vperm.slane %v2262, %v2276
    %v2279 = vunpack.c.l.s4 1987475062
    %v2280 = vunpack.c.0.s8 %v2279
    %v2281 = vperm.slane %v2262, %v2280
    %v2283 = vunpack.c.l.s4 269488144
    %v2284 = vunpack.c.0.s8 %v2283
    %v2285 = vperm.slane %v2263, %v2284
    %v2287 = vunpack.c.l.s4 842150450
    %v2288 = vunpack.c.0.s8 %v2287
    %v2289 = vperm.slane %v2263, %v2288
    %v2291 = vunpack.c.l.s4 1414812756
    %v2292 = vunpack.c.0.s8 %v2291
    %v2293 = vperm.slane %v2263, %v2292
    %v2295 = vunpack.c.l.s4 1987475062
    %v2296 = vunpack.c.0.s8 %v2295
    %v2297 = vperm.slane %v2263, %v2296
    %v2306 = vsub.f32 %v2219, %v2269
    %v2307 = vsub.f32 %v2220, %v2273
    %v2308 = vsub.f32 %v2221, %v2277
    %v2309 = vsub.f32 %v2222, %v2281
    %v2310 = vsub.f32 %v2223, %v2285
    %v2311 = vsub.f32 %v2224, %v2289
    %v2312 = vsub.f32 %v2225, %v2293
    %v2313 = vsub.f32 %v2226, %v2297
    %v2314 = vmul.f32 %v2306, %v2306
    %v2315 = vmul.f32 %v2307, %v2307
    %v2316 = vmul.f32 %v2308, %v2308
    %v2317 = vmul.f32 %v2309, %v2309
    %v2318 = vmul.f32 %v2310, %v2310
    %v2319 = vmul.f32 %v2311, %v2311
    %v2320 = vmul.f32 %v2312, %v2312
    %v2321 = vmul.f32 %v2313, %v2313
    %2330 = vst [vmem:[#allocation1] ss:$4 sm:$0xff] %v2314
    %s2331 = scalar_lea.vmem [#allocation1], 1
    %2332 = vst [vmem:[%s2331] ss:$4 sm:$0xff] %v2315
    %s2333 = scalar_lea.vmem [#allocation1], 2
    %2334 = vst [vmem:[%s2333] ss:$4 sm:$0xff] %v2316
    %s2335 = scalar_lea.vmem [#allocation1], 3
    %2336 = vst [vmem:[%s2335] ss:$4 sm:$0xff] %v2317
    %s2337 = scalar_lea.vmem [#allocation1], 32
    %2338 = vst [vmem:[%s2337] ss:$4 sm:$0xff] %v2318
    %s2339 = scalar_lea.vmem [#allocation1], 33
    %2340 = vst [vmem:[%s2339] ss:$4 sm:$0xff] %v2319
    %s2341 = scalar_lea.vmem [#allocation1], 34
    %2342 = vst [vmem:[%s2341] ss:$4 sm:$0xff] %v2320
    %s2343 = scalar_lea.vmem [#allocation1], 35
    %2344 = vst [vmem:[%s2343] ss:$4 sm:$0xff] %v2321
    %v2345 = vld.sshfl [vmem:[#allocation1] sm:$0xff pattern:$0x73625140]
    %v2346 = vld.sshfl [vmem:[#allocation1 + $0x20] sm:$0xff pattern:$0x73625140]
    %v2349 = vsel %vm216, %v2345, 0.0
    %2350 = vadd.xlane.f32.xlu0 %v2349
    %v2351 = vpop.xlane.xlu0 %2350
    %v2352 = vsel %vm216, %v2346, 0.0
    %2353 = vadd.xlane.f32.xlu0 %v2352
    %v2354 = vpop.xlane.xlu0 %2353
    %v2355 = vmul.f32 %v2351, %v229
    %v2356 = vmul.f32 %v2354, %v229
    %v2357 = vadd.f32 %v2355, 1e-05
    %v2358 = vadd.f32 %v2356, 1e-05
    %v2359 = vrsqrt.pop %v2357
    %v2360 = vmul.f32 %v2359, %v2357
    %v2361 = vmul.f32 %v2360, %v2359
    %v2362 = vmul.f32 0.5, %v2361
    %v2363 = vsub.f32 1.5, %v2362
    %v2364 = vmul.f32 %v2359, %v2363
    %vm2365 = vweird.f32 %v2357
    %vm2366 = vweird.f32 %v2359
    %vm2367 = vmor %vm2365, %vm2366
    %v2368 = vsel %vm2367, %v2359, %v2364
    %v2369 = vrsqrt.pop %v2358
    %v2370 = vmul.f32 %v2369, %v2358
    %v2371 = vmul.f32 %v2370, %v2369
    %v2372 = vmul.f32 0.5, %v2371
    %v2373 = vsub.f32 1.5, %v2372
    %v2374 = vmul.f32 %v2369, %v2373
    %vm2375 = vweird.f32 %v2358
    %vm2376 = vweird.f32 %v2369
    %vm2377 = vmor %vm2375, %vm2376
    %v2378 = vsel %vm2377, %v2369, %v2374
    %v2382 = vunpack.c.l.s4 269488144
    %v2383 = vunpack.c.0.s8 %v2382
    %v2384 = vperm.slane %v2368, %v2383
    %v2386 = vunpack.c.l.s4 842150450
    %v2387 = vunpack.c.0.s8 %v2386
    %v2388 = vperm.slane %v2368, %v2387
    %v2390 = vunpack.c.l.s4 1414812756
    %v2391 = vunpack.c.0.s8 %v2390
    %v2392 = vperm.slane %v2368, %v2391
    %v2394 = vunpack.c.l.s4 1987475062
    %v2395 = vunpack.c.0.s8 %v2394
    %v2396 = vperm.slane %v2368, %v2395
    %v2398 = vunpack.c.l.s4 269488144
    %v2399 = vunpack.c.0.s8 %v2398
    %v2400 = vperm.slane %v2378, %v2399
    %v2402 = vunpack.c.l.s4 842150450
    %v2403 = vunpack.c.0.s8 %v2402
    %v2404 = vperm.slane %v2378, %v2403
    %v2406 = vunpack.c.l.s4 1414812756
    %v2407 = vunpack.c.0.s8 %v2406
    %v2408 = vperm.slane %v2378, %v2407
    %v2410 = vunpack.c.l.s4 1987475062
    %v2411 = vunpack.c.0.s8 %v2410
    %v2412 = vperm.slane %v2378, %v2411
    %v2421 = vmul.f32 %v2306, %v2384
    %v2422 = vmul.f32 %v2307, %v2388
    %v2423 = vmul.f32 %v2308, %v2392
    %v2424 = vmul.f32 %v2309, %v2396
    %v2425 = vmul.f32 %v2310, %v2400
    %v2426 = vmul.f32 %v2311, %v2404
    %v2427 = vmul.f32 %v2312, %v2408
    %v2428 = vmul.f32 %v2313, %v2412
    %v2430 = vperm.slane %v2227, 0
    %v2432 = vrot.slane %v2430, 2
    %v2433 = vrot.slane %v2430, 4
    %v2434 = vrot.slane %v2430, 6
    %v2438 = vmul.f32 %v2421, %v2430
    %v2439 = vmul.f32 %v2422, %v2432
    %v2440 = vmul.f32 %v2423, %v2433
    %v2441 = vmul.f32 %v2424, %v2434
    %v2442 = vmul.f32 %v2425, %v2430
    %v2443 = vmul.f32 %v2426, %v2432
    %v2444 = vmul.f32 %v2427, %v2433
    %v2445 = vmul.f32 %v2428, %v2434
    %v2447 = vperm.slane %v2228, 0
    %v2449 = vrot.slane %v2447, 2
    %v2450 = vrot.slane %v2447, 4
    %v2451 = vrot.slane %v2447, 6
    %v2455 = vadd.f32 %v2438, %v2447
    %v2456 = vadd.f32 %v2439, %v2449
    %v2457 = vadd.f32 %v2440, %v2450
    %v2458 = vadd.f32 %v2441, %v2451
    %v2459 = vadd.f32 %v2442, %v2447
    %v2460 = vadd.f32 %v2443, %v2449
    %v2461 = vadd.f32 %v2444, %v2450
    %v2462 = vadd.f32 %v2445, %v2451
    %v2463 = vld [vmem:[#allocation10] sm:$0xff]
    %v2464 = vld [vmem:[#allocation10 + $0x8] sm:$0xff]
    %v2465 = vld [vmem:[#allocation10 + $0x10] sm:$0xff]
    %v2466 = vld [vmem:[#allocation10 + $0x18] sm:$0xff]
    %v2467 = vld [vmem:[%s18] sm:$0x1]
    %v2469 = vperm.slane %v2467, 0
    %2479 = vst [vmem:[#allocation1] ss:$4 sm:$0xff] %v2455
    %s2480 = scalar_lea.vmem [#allocation1], 1
    %2481 = vst [vmem:[%s2480] ss:$4 sm:$0xff] %v2456
    %s2482 = scalar_lea.vmem [#allocation1], 2
    %2483 = vst [vmem:[%s2482] ss:$4 sm:$0xff] %v2457
    %s2484 = scalar_lea.vmem [#allocation1], 3
    %2485 = vst [vmem:[%s2484] ss:$4 sm:$0xff] %v2458
    %s2486 = scalar_lea.vmem [#allocation1], 32
    %2487 = vst [vmem:[%s2486] ss:$4 sm:$0xff] %v2459
    %s2488 = scalar_lea.vmem [#allocation1], 33
    %2489 = vst [vmem:[%s2488] ss:$4 sm:$0xff] %v2460
    %s2490 = scalar_lea.vmem [#allocation1], 34
    %2491 = vst [vmem:[%s2490] ss:$4 sm:$0xff] %v2461
    %s2492 = scalar_lea.vmem [#allocation1], 35
    %2493 = vst [vmem:[%s2492] ss:$4 sm:$0xff] %v2462
    %v2494 = vld.sshfl [vmem:[#allocation1] sm:$0xff pattern:$0x73625140]
    %v2495 = vld.sshfl [vmem:[#allocation1 + $0x20] sm:$0xff pattern:$0x73625140]
    %v2496 = vsel %vm216, %v2494, 0
    %v2498 = vsel %vm216, %v2495, 0
    %2500 = vmatpush.msra.mxu0 0.0
    %2501 = vmatpush.msra.mxu0 0.0
    %2502 = vmatpush.msra.mxu0 0.0
    %2503 = vmatpush.msra.mxu0 0.0
    %2504 = vmatpush.msra.mxu0 0.0
    %2505 = vmatpush.msra.mxu0 0.0
    %2506 = vmatpush.msra.mxu0 0.0
    %2507 = vmatpush.msra.mxu0 0.0
    %2508 = vmatpush.msra.mxu0 0.0
    %2509 = vmatpush.msra.mxu0 0.0
    %2510 = vmatpush.msra.mxu0 0.0
    %2511 = vmatpush.msra.mxu0 0.0
    %2512 = vmatpush.msra.mxu0 %v2466
    %2513 = vmatpush.msra.mxu0 %v2465
    %2514 = vmatpush.msra.mxu0 %v2464
    %2515 = vmatpush.msra.mxu0 %v2463
    %2516 = vmatmul.f32.gmra.mxu0 %v2496
    %v2517 = vpop.f32.mrf.mxu0
    %v2518 = vadd.f32 %v2469, %v2517
    %2519 = vmatmul.f32.gmra.mxu0 %v2498
    %v2520 = vpop.f32.mrf.mxu0
    %v2521 = vadd.f32 %v2469, %v2520
    %2522 = vdwg.mxu0
    %v2523 = vmul.f32 %v2518, 1.702
    %v2524 = vmul.f32 %v2521, 1.702
    %v2525 = vxor.u32 %v2523, 2147483648
    %v2526 = vxor.u32 %v2524, 2147483648
    %v2527 = vmul.f32 %v2525, 1.442695
    %v2528 = vpow.pop %v2527
    %v2529 = vmul.f32 %v2526, 1.442695
    %v2530 = vpow.pop %v2529
    %v2531 = vadd.f32 %v2528, 1.0
    %v2532 = vadd.f32 %v2530, 1.0
    %v2533 = vrcp.pop %v2531
    %v2534 = vmul.f32 %v2531, %v2533
    %v2535 = vsub.f32 1.0, %v2534
    %v2536 = vmul.f32 %v2533, %v2535
    %v2537 = vadd.f32 %v2533, %v2536
    %vm2538 = vweird.f32 %v2531
    %vm2539 = vweird.f32 %v2533
    %vm2540 = vmor %vm2538, %vm2539
    %v2541 = vsel %vm2540, %v2533, %v2537
    %v2542 = vand.u32 2147483647, %v2531
    %vm2543 = vcmp.eq.f32.partialorder %v2542, 8.507059e+37
    %v2544 = vand.u32 %v2531, 2147483648
    %v2545 = vor.u32 1.1754944e-38, %v2544
    %v2546 = vsel %vm2543, %v2545, %v2541
    %v2547 = vmul.f32 1.0, %v2546
    %v2548 = vrcp.pop %v2532
    %v2549 = vmul.f32 %v2532, %v2548
    %v2550 = vsub.f32 1.0, %v2549
    %v2551 = vmul.f32 %v2548, %v2550
    %v2552 = vadd.f32 %v2548, %v2551
    %vm2553 = vweird.f32 %v2532
    %vm2554 = vweird.f32 %v2548
    %vm2555 = vmor %vm2553, %vm2554
    %v2556 = vsel %vm2555, %v2548, %v2552
    %v2557 = vand.u32 2147483647, %v2532
    %vm2558 = vcmp.eq.f32.partialorder %v2557, 8.507059e+37
    %v2559 = vand.u32 %v2532, 2147483648
    %v2560 = vor.u32 1.1754944e-38, %v2559
    %v2561 = vsel %vm2558, %v2560, %v2556
    %v2562 = vmul.f32 1.0, %v2561
    %v2563 = vmul.f32 %v2518, %v2547
    %v2564 = vmul.f32 %v2521, %v2562
    %v2565 = vld [vmem:[%s19] sm:$0xff]
    %v2566 = vld [vmem:[%s19 + $0x8] sm:$0xff]
    %v2567 = vld [vmem:[%s19 + $0x10] sm:$0xff]
    %v2568 = vld [vmem:[%s19 + $0x18] sm:$0xff]
    %v2569 = vld [vmem:[%s19 + $0x20] sm:$0xff]
    %v2570 = vld [vmem:[%s19 + $0x28] sm:$0xff]
    %v2571 = vld [vmem:[%s19 + $0x30] sm:$0xff]
    %v2572 = vld [vmem:[%s19 + $0x38] sm:$0xff]
    %v2573 = vld [vmem:[%s19 + $0x40] sm:$0xff]
    %v2574 = vld [vmem:[%s19 + $0x48] sm:$0xff]
    %v2575 = vld [vmem:[%s19 + $0x50] sm:$0xff]
    %v2576 = vld [vmem:[%s19 + $0x58] sm:$0xff]
    %v2577 = vld [vmem:[%s19 + $0x60] sm:$0xff]
    %v2578 = vld [vmem:[%s19 + $0x68] sm:$0xff]
    %v2579 = vld [vmem:[%s19 + $0x70] sm:$0xff]
    %v2580 = vld [vmem:[%s19 + $0x78] sm:$0xff]
    %v2581 = vld [vmem:[%s20] sm:$0x1]
    %v2583 = vperm.slane %v2581, 0
    %2585 = vmatpush.msra.mxu0 %v2580
    %2586 = vmatpush.msra.mxu0 %v2579
    %2587 = vmatpush.msra.mxu0 %v2578
    %2588 = vmatpush.msra.mxu0 %v2577
    %2589 = vmatpush.msra.mxu0 %v2576
    %2590 = vmatpush.msra.mxu0 %v2575
    %2591 = vmatpush.msra.mxu0 %v2574
    %2592 = vmatpush.msra.mxu0 %v2573
    %2593 = vmatpush.msra.mxu0 %v2572
    %2594 = vmatpush.msra.mxu0 %v2571
    %2595 = vmatpush.msra.mxu0 %v2570
    %2596 = vmatpush.msra.mxu0 %v2569
    %2597 = vmatpush.msra.mxu0 %v2568
    %2598 = vmatpush.msra.mxu0 %v2567
    %2599 = vmatpush.msra.mxu0 %v2566
    %2600 = vmatpush.msra.mxu0 %v2565
    %2601 = vmatmul.f32.gmra.mxu0 %v2563
    %v2602 = vpop.f32.mrf.mxu0
    %v2603 = vadd.f32 %v2583, %v2602
    %2604 = vmatmul.f32.gmra.mxu0 %v2564
    %v2605 = vpop.f32.mrf.mxu0
    %v2606 = vadd.f32 %v2583, %v2605
    %2607 = vdwg.mxu0
    %v2610 = vrot.slane %v2603, 2
    %v2611 = vrot.slane %v2603, 4
    %v2612 = vrot.slane %v2603, 6
    %v2613 = vrot.slane %v2606, 2
    %v2614 = vrot.slane %v2606, 4
    %v2615 = vrot.slane %v2606, 6
    %v2622 = vadd.f32 %v2219, %v2603
    %v2623 = vadd.f32 %v2220, %v2610
    %v2624 = vadd.f32 %v2221, %v2611
    %v2625 = vadd.f32 %v2222, %v2612
    %v2626 = vadd.f32 %v2223, %v2606
    %v2627 = vadd.f32 %v2224, %v2613
    %v2628 = vadd.f32 %v2225, %v2614
    %v2629 = vadd.f32 %v2226, %v2615
    %vm2630 = vcmask 254976
    %2631 = vst.msk [vmem:[#allocation11] sm:$0x3] %vm2630, %v2622
    %2632 = vst.msk [vmem:[#allocation11 + $0x2] sm:$0x3] %vm2630, %v2623
    %2633 = vst.msk [vmem:[#allocation11 + $0x4] sm:$0x3] %vm2630, %v2624
    %2634 = vst.msk [vmem:[#allocation11 + $0x6] sm:$0x3] %vm2630, %v2625
    %2635 = vst.msk [vmem:[#allocation11 + $0x8] sm:$0x3] %vm2630, %v2626
    %2636 = vst.msk [vmem:[#allocation11 + $0xa] sm:$0x3] %vm2630, %v2627
    %2637 = vst.msk [vmem:[#allocation11 + $0xc] sm:$0x3] %vm2630, %v2628
    %2638 = vst.msk [vmem:[#allocation11 + $0xe] sm:$0x3] %vm2630, %v2629
    // Predicated region
    $region106: #{tpu_custom_call.1} parent=1 // pred_check
      _
    $region107: #{tpu_custom_call.1} parent=1 // pred_check_branch
      %2640 = sbr.rel (0) target = $region109
    $region108: #{tpu_custom_call.1} parent=1 // pred_region
      %2642 = vsyncadd [#allocation4], 0
      %s2643 = sshll.u32 [#allocation11], 4
      %s2644 = int_to_ptr.vmem [resolvable:$true] %s2643
      %s2645 = sshll.u32 %s21, 4
      %s2646 = int_to_ptr.hbm [resolvable:$true] %s2645
      %2651 = dma.vmem_to_hbm [thread:$0]  %s2644, 256, %s2646, [#allocation4], 32, 32, 2
    $region109: #{tpu_custom_call.1} parent=1 // pred_fallthru
      _
    // Predicated region
    $region110: #{tpu_custom_call.1} parent=1 // pred_check
      _
    $region111: #{tpu_custom_call.1} parent=1 // pred_check_branch
      %2653 = sbr.rel (0) target = $region113
    $region112: #{tpu_custom_call.1} parent=1 // pred_region
      %2655 = dma.done [#allocation4], 256
    $region113: #{tpu_custom_call.1} parent=1 // pred_fallthru
      _
    %2656 = vsyncpa [#allocation3], 1
    %2657 = vsyncpa [#allocation6], 1
    %2658 = vsyncpa [#allocation9], 1
    %2659 = vsyncpa [#allocation4], 1

</llo_original>
